<compile_context>
chip_gen: v7x
topology: tpu7x:2x2x1
jax: 0.10.0
libtpu: 0.0.40
codegen_flags: <defaults>
</compile_context>

<pallas_src>
import math

import jax
import jax.numpy as jnp
from jax.experimental import pallas as pl
from jax.experimental.pallas import tpu as pltpu


def _make_vae_kernel(n_enc, n_dec):
    """Kernel closed over the static encoder/decoder layer counts.

    Ref order:
      inputs : x, eps,
               (W_enc_i, b_enc_i) * n_enc,
               W_mu, b_mu, W_logvar, b_logvar,
               (W_dec_i, b_dec_i) * n_dec
      outputs: recon, mu, logvar, z   (4 whole-ref stores; no in-register concat)
    """

    def kernel(*refs):
        idx = 0
        x_ref = refs[idx]; idx += 1
        eps_ref = refs[idx]; idx += 1
        enc = [(refs[idx + 2 * i], refs[idx + 2 * i + 1]) for i in range(n_enc)]
        idx += 2 * n_enc
        w_mu_ref, b_mu_ref = refs[idx], refs[idx + 1]; idx += 2
        w_lv_ref, b_lv_ref = refs[idx], refs[idx + 1]; idx += 2
        dec = [(refs[idx + 2 * i], refs[idx + 2 * i + 1]) for i in range(n_dec)]
        idx += 2 * n_dec
        recon_ref, mu_ref, logvar_ref, z_ref = refs[idx:idx + 4]

        # ----- encoder: tanh(x @ W + b) chain; bf16 MXU operands, f32 accumulation -----
        h = x_ref[...]                                   # f32 activations throughout
        for w_ref, b_ref in enc:
            h = jnp.tanh(
                jnp.dot(h.astype(w_ref.dtype), w_ref[...],
                        preferred_element_type=jnp.float32) + b_ref[...])

        # ----- mu / logvar heads: two separate matmuls (d_lat is tiny; avoids a
        # lane-unaligned slice of a fused [.., 2*d_lat] result) -----
        h_lo = h.astype(w_mu_ref.dtype)
        mu = jnp.dot(h_lo, w_mu_ref[...],
                     preferred_element_type=jnp.float32) + b_mu_ref[...]
        logvar = jnp.dot(h_lo, w_lv_ref[...],
                         preferred_element_type=jnp.float32) + b_lv_ref[...]

        # ----- reparameterization: z = mu + eps * exp(0.5 * logvar)  (f32, exp on EUP) -----
        std = jnp.exp(0.5 * logvar)
        z = mu + eps_ref[...] * std

        # ----- decoder: tanh on all layers except the last -----
        g = z
        for i, (w_ref, b_ref) in enumerate(dec):
            g = jnp.dot(g.astype(w_ref.dtype), w_ref[...],
                        preferred_element_type=jnp.float32) + b_ref[...]
            if i < n_dec - 1:
                g = jnp.tanh(g)

        # ----- four whole-ref stores (no concat / cross-lane shuffle) -----
        recon_ref[...] = g.astype(recon_ref.dtype)
        mu_ref[...] = mu.astype(mu_ref.dtype)
        logvar_ref[...] = logvar.astype(logvar_ref.dtype)
        z_ref[...] = z.astype(z_ref.dtype)

    return kernel


def _round_up(x, m):
    return ((x + m - 1) // m) * m


def _cdiv(a, b):
    return (a + b - 1) // b


def _vmem_capacity_bytes():
    """Physical VMEM per TensorCore; generation-aware with a conservative fallback."""
    try:
        info = pltpu.get_tpu_info()
        cap = getattr(info, "vmem_capacity_bytes", None)
        if cap:
            return int(cap)
    except Exception:
        pass
    return 64 << 20  # v7x has the smallest VMEM (64 MiB/TC); safe on all generations


def _pick_batch_tile(batch, io_row_bytes, interm_row_bytes, param_bytes, vmem_budget):
    """Largest power-of-two batch tile whose footprint fits the budget.

    Only x/eps and the four outputs are double-buffered DMA streams; the weights are
    VMEM-resident (counted twice for safety in case they stay double-buffered) and
    the intermediate activations live once.
    """
    b8 = _round_up(batch, 8)
    tb = 1024
    while tb > 8 and (2 * param_bytes
                      + tb * (2 * io_row_bytes + interm_row_bytes)) > vmem_budget:
        tb //= 2
    # MXU-M floor: with tiny feature widths, TB is the only matmul dim we control.
    tb = max(tb, 256)
    tb = min(tb, b8)
    # Megacore: guarantee >= 2 grid steps so both v7x TensorCores get a tile
    # (costs one extra ~0.35us grid step on single-TC v5e/v6e — negligible).
    if batch > 8:
        tb = min(tb, _round_up(_cdiv(batch, 2), 8))
    return max(8, _round_up(tb, 8))


def standard_vae_forward(x, eps, enc_params, mu_params, logvar_params, dec_params,
                         *, batch_tile=None):
    """Returns [recon, x, mu, logvar, z] — same list the PyTorch forward returns."""
    n_enc = len(enc_params)
    n_dec = len(dec_params)
    B, D_in = x.shape
    D_lat = mu_params[0].shape[1]

    flat_params = []
    for w, b in enc_params:
        flat_params += [w, b]
    flat_params += [mu_params[0], mu_params[1], logvar_params[0], logvar_params[1]]
    for w, b in dec_params:
        flat_params += [w, b]

    param_bytes = sum(int(p.size) * p.dtype.itemsize for p in flat_params)

    # Per-row bytes of the streams that are actually double-buffered (x, eps, outputs).
    in_row_bytes = D_in * x.dtype.itemsize + D_lat * eps.dtype.itemsize
    out_row_bytes = (D_in + 3 * D_lat) * 4                      # f32 outputs
    io_row_bytes = in_row_bytes + out_row_bytes
    # One-time allowance for live intermediate activations (f32) — NOT multiplied by 4.
    layer_widths = ([D_in] + [w.shape[1] for w, _ in enc_params] + [2 * D_lat]
                    + [w.shape[1] for w, _ in dec_params])
    interm_row_bytes = 4 * sum(layer_widths)

    vmem_capacity = _vmem_capacity_bytes()
    vmem_budget = min((3 * vmem_capacity) // 4, vmem_capacity - (16 << 20))

    if batch_tile is None:
        TB = _pick_batch_tile(B, io_row_bytes, interm_row_bytes, param_bytes, vmem_budget)
    else:
        TB = max(8, _round_up(batch_tile, 8))
    B_pad = _round_up(B, TB)
    grid = (B_pad // TB,)

    if B_pad != B:  # ragged last tile -> zero-pad the batch, slice back afterwards
        x_p = jnp.pad(x, ((0, B_pad - B), (0, 0)))
        eps_p = jnp.pad(eps, ((0, B_pad - B), (0, 0)))
    else:
        x_p, eps_p = x, eps

    # Cost hint so XLA schedules surrounding ops sensibly around the custom call.
    dot_dims = ([(w.shape[0], w.shape[1]) for w, _ in enc_params]
                + [(mu_params[0].shape[0], D_lat), (logvar_params[0].shape[0], D_lat)]
                + [(w.shape[0], w.shape[1]) for w, _ in dec_params])
    flops = 2 * B_pad * sum(i * o for i, o in dot_dims)
    transcendentals = B_pad * (sum(w.shape[1] for w, _ in enc_params)          # encoder tanh
                               + D_lat                                         # exp in reparam
                               + sum(w.shape[1] for w, _ in dec_params[:-1]))  # decoder tanh
    bytes_accessed = (x_p.size * x_p.dtype.itemsize + eps_p.size * eps_p.dtype.itemsize
                      + param_bytes + B_pad * out_row_bytes)

    need = 2 * param_bytes + TB * (2 * io_row_bytes + interm_row_bytes) + (4 << 20)
    vmem_limit = int(min(max(need, 16 << 20), vmem_budget))

    kernel = _make_vae_kernel(n_enc, n_dec)
    out_shape = (jax.ShapeDtypeStruct((B_pad, D_in), jnp.float32),
                 jax.ShapeDtypeStruct((B_pad, D_lat), jnp.float32),
                 jax.ShapeDtypeStruct((B_pad, D_lat), jnp.float32),
                 jax.ShapeDtypeStruct((B_pad, D_lat), jnp.float32))
    out_specs = (pl.BlockSpec((TB, D_in), lambda i: (i, 0)),
                 pl.BlockSpec((TB, D_lat), lambda i: (i, 0)),
                 pl.BlockSpec((TB, D_lat), lambda i: (i, 0)),
                 pl.BlockSpec((TB, D_lat), lambda i: (i, 0)))

    def act_spec(d):
        return pl.BlockSpec((TB, d), lambda i: (i, 0))

    def const_spec(arr, single_buffer):
        # Full-array block, constant index_map: parameter stays VMEM-resident.
        if single_buffer:
            try:
                return pl.BlockSpec(arr.shape, lambda i: (0, 0),
                                    pipeline_mode=pl.Buffered(1))
            except Exception:
                pass
        return pl.BlockSpec(arr.shape, lambda i: (0, 0))

    def _call(single_buffer_params):
        in_specs = ([act_spec(D_in), act_spec(D_lat)]
                    + [const_spec(p, single_buffer_params) for p in flat_params])
        return pl.pallas_call(
            kernel,
            out_shape=out_shape,
            grid=grid,
            in_specs=in_specs,
            out_specs=out_specs,
            compiler_params=pltpu.CompilerParams(
                dimension_semantics=("parallel",),   # megacore: batch tiles shard across TCs
                vmem_limit_bytes=vmem_limit),
            cost_estimate=pl.CostEstimate(flops=int(flops),
                                          transcendentals=int(transcendentals),
                                          bytes_accessed=int(bytes_accessed)),
        )(x_p, eps_p, *flat_params)

    try:
        recon_p, mu_p, logvar_p, z_p = _call(True)
    except Exception:
        # pl.Buffered(1) constant specs unsupported on this jax version/backend;
        # fall back to default double-buffered parameter specs.
        recon_p, mu_p, logvar_p, z_p = _call(False)

    return [recon_p[:B], x, mu_p[:B], logvar_p[:B], z_p[:B]]


def _init_linear(key, fan_in, fan_out):
    """torch.nn.Linear-style init (U[-1/sqrt(in), 1/sqrt(in)]).
    Weights stored [in, out] in bf16 (MXU-native, half the resident VMEM);
    biases stay f32 (added after f32 accumulation)."""
    kw, kb = jax.random.split(key)
    bound = 1.0 / math.sqrt(float(fan_in))
    w = jax.random.uniform(kw, (fan_in, fan_out), jnp.float32, -bound, bound).astype(jnp.bfloat16)
    b = jax.random.uniform(kb, (1, fan_out), jnp.float32, -bound, bound)
    return w, b


def build_params(key, layers_structure):
    """Builds encoder / mu / logvar / decoder params matching StandardVAE.__init__."""
    rev = layers_structure[::-1]
    n_enc = len(layers_structure) - 2
    n_dec = len(rev) - 1
    keys = jax.random.split(key, n_enc + 2 + n_dec)
    k = 0

    enc_params = []
    for i in range(n_enc):
        enc_params.append(_init_linear(keys[k], layers_structure[i], layers_structure[i + 1]))
        k += 1
    mu_params = _init_linear(keys[k], layers_structure[-2], layers_structure[-1]); k += 1
    logvar_params = _init_linear(keys[k], layers_structure[-2], layers_structure[-1]); k += 1
    dec_params = []
    for i in range(n_dec):
        dec_params.append(_init_linear(keys[k], rev[i], rev[i + 1]))
        k += 1
    return enc_params, mu_params, logvar_params, dec_params


def _linear(h, w, b):
    # Same math as the kernel: bf16 operands, f32 accumulation, f32 bias add.
    return jnp.dot(h.astype(w.dtype), w, preferred_element_type=jnp.float32) + b


def _reference_forward(x, eps, enc_params, mu_params, logvar_params, dec_params):
    """Pure-JAX reference (mirrors the PyTorch module) for the correctness check."""
    h = x.astype(jnp.float32)
    for w, b in enc_params:
        h = jnp.tanh(_linear(h, w, b))
    mu = _linear(h, mu_params[0], mu_params[1])
    logvar = _linear(h, logvar_params[0], logvar_params[1])
    z = mu + eps * jnp.exp(0.5 * logvar)
    g = z
    for i, (w, b) in enumerate(dec_params):
        g = _linear(g, w, b)
        if i < len(dec_params) - 1:
            g = jnp.tanh(g)
    return [g, x, mu, logvar, z]


if __name__ == "__main__":
    # Structure: input 16 -> hidden 32 -> latent 8 (decoder symmetric: 8 -> 32 -> 16).
    layers_structure = [16, 32, 8]
    batch = 20  # deliberately NOT a tile multiple: exercises padding + the >=2-tile grid

    key = jax.random.PRNGKey(0)
    k_params, k_x, k_eps = jax.random.split(key, 3)

    enc_params, mu_params, logvar_params, dec_params = build_params(k_params, layers_structure)

    x = jax.random.normal(k_x, (batch, layers_structure[0]), jnp.float32)
    # eps replaces torch.randn_like(std) — drawn deterministically outside the kernel.
    eps = jax.random.normal(k_eps, (batch, layers_structure[-1]), jnp.float32)

    outs = standard_vae_forward(x, eps, enc_params, mu_params, logvar_params, dec_params)
    outs = jax.block_until_ready(outs)

    refs = _reference_forward(x, eps, enc_params, mu_params, logvar_params, dec_params)
    names = ["recon", "x", "mu", "logvar", "z"]
    for name, o, r in zip(names, outs, refs):
        assert o.shape == r.shape, f"{name}: shape {o.shape} vs {r.shape}"
        assert jnp.allclose(o, r, atol=2e-3, rtol=2e-3), f"{name}: mismatch vs reference"

    print("KERNEL_OK")
</pallas_src>

<mosaic_0001>
module attributes {stable_mosaic.version = 11 : i64} {
  func.func @kernel(%arg0: i32, %arg1: memref<16x16xf32, #tpu.memory_space<vmem>>, %arg2: memref<16x8xf32, #tpu.memory_space<vmem>>, %arg3: memref<16x32xbf16, #tpu.memory_space<vmem>>, %arg4: memref<1x32xf32, #tpu.memory_space<vmem>>, %arg5: memref<32x8xbf16, #tpu.memory_space<vmem>>, %arg6: memref<1x8xf32, #tpu.memory_space<vmem>>, %arg7: memref<32x8xbf16, #tpu.memory_space<vmem>>, %arg8: memref<1x8xf32, #tpu.memory_space<vmem>>, %arg9: memref<8x32xbf16, #tpu.memory_space<vmem>>, %arg10: memref<1x32xf32, #tpu.memory_space<vmem>>, %arg11: memref<32x16xbf16, #tpu.memory_space<vmem>>, %arg12: memref<1x16xf32, #tpu.memory_space<vmem>>, %arg13: memref<16x16xf32, #tpu.memory_space<vmem>>, %arg14: memref<16x8xf32, #tpu.memory_space<vmem>>, %arg15: memref<16x8xf32, #tpu.memory_space<vmem>>, %arg16: memref<16x8xf32, #tpu.memory_space<vmem>>) attributes {dimension_semantics = [#tpu.dimension_semantics<parallel>], iteration_bounds = array<i64: 2>, scalar_prefetch = 0 : i64, scratch_operands = 0 : i64, tpu.core_type = #tpu.core_type<tc>, window_params = [{transform_indices = @transform_0, window_bounds = array<i64: 16, 16>}, {transform_indices = @transform_1, window_bounds = array<i64: 16, 8>}, {pipeline_mode = #tpu.pipeline_mode<synchronous>, transform_indices = @transform_2, window_bounds = array<i64: 16, 32>}, {pipeline_mode = #tpu.pipeline_mode<synchronous>, transform_indices = @transform_3, window_bounds = array<i64: 1, 32>}, {pipeline_mode = #tpu.pipeline_mode<synchronous>, transform_indices = @transform_4, window_bounds = array<i64: 32, 8>}, {pipeline_mode = #tpu.pipeline_mode<synchronous>, transform_indices = @transform_5, window_bounds = array<i64: 1, 8>}, {pipeline_mode = #tpu.pipeline_mode<synchronous>, transform_indices = @transform_6, window_bounds = array<i64: 32, 8>}, {pipeline_mode = #tpu.pipeline_mode<synchronous>, transform_indices = @transform_7, window_bounds = array<i64: 1, 8>}, {pipeline_mode = #tpu.pipeline_mode<synchronous>, transform_indices = @transform_8, window_bounds = array<i64: 8, 32>}, {pipeline_mode = #tpu.pipeline_mode<synchronous>, transform_indices = @transform_9, window_bounds = array<i64: 1, 32>}, {pipeline_mode = #tpu.pipeline_mode<synchronous>, transform_indices = @transform_10, window_bounds = array<i64: 32, 16>}, {pipeline_mode = #tpu.pipeline_mode<synchronous>, transform_indices = @transform_11, window_bounds = array<i64: 1, 16>}, {transform_indices = @transform_12, window_bounds = array<i64: 16, 16>}, {transform_indices = @transform_13, window_bounds = array<i64: 16, 8>}, {transform_indices = @transform_14, window_bounds = array<i64: 16, 8>}, {transform_indices = @transform_15, window_bounds = array<i64: 16, 8>}]} {
    %c0 = arith.constant 0 : index
    %c0_0 = arith.constant 0 : index
    %0 = vector.load %arg1[%c0, %c0_0] : memref<16x16xf32, #tpu.memory_space<vmem>>, vector<16x16xf32>
    %1 = arith.truncf %0 : vector<16x16xf32> to vector<16x16xbf16>
    %c0_1 = arith.constant 0 : index
    %c0_2 = arith.constant 0 : index
    %2 = vector.load %arg3[%c0_1, %c0_2] : memref<16x32xbf16, #tpu.memory_space<vmem>>, vector<16x32xbf16>
    %cst = arith.constant dense<0.000000e+00> : vector<16x32xf32>
    %3 = tpu.matmul %1, %2, %cst {dimension_numbers = #tpu.dot_dimension_numbers<[1], [0], [0], [1], [0, 0, 1, 1], [], []>} : vector<16x16xbf16>, vector<16x32xbf16>, vector<16x32xf32> -> vector<16x32xf32>
    %c0_3 = arith.constant 0 : index
    %c0_4 = arith.constant 0 : index
    %4 = vector.load %arg4[%c0_3, %c0_4] : memref<1x32xf32, #tpu.memory_space<vmem>>, vector<1x32xf32>
    %5 = vector.broadcast %4 : vector<1x32xf32> to vector<16x32xf32>
    %6 = arith.addf %3, %5 : vector<16x32xf32>
    %7 = math.tanh %6 : vector<16x32xf32>
    %8 = arith.truncf %7 : vector<16x32xf32> to vector<16x32xbf16>
    %c0_5 = arith.constant 0 : index
    %c0_6 = arith.constant 0 : index
    %9 = vector.load %arg5[%c0_5, %c0_6] : memref<32x8xbf16, #tpu.memory_space<vmem>>, vector<32x8xbf16>
    %cst_7 = arith.constant dense<0.000000e+00> : vector<16x8xf32>
    %10 = tpu.matmul %8, %9, %cst_7 {dimension_numbers = #tpu.dot_dimension_numbers<[1], [0], [0], [1], [0, 0, 1, 1], [], []>} : vector<16x32xbf16>, vector<32x8xbf16>, vector<16x8xf32> -> vector<16x8xf32>
    %c0_8 = arith.constant 0 : index
    %c0_9 = arith.constant 0 : index
    %11 = vector.load %arg6[%c0_8, %c0_9] : memref<1x8xf32, #tpu.memory_space<vmem>>, vector<1x8xf32>
    %12 = vector.broadcast %11 : vector<1x8xf32> to vector<16x8xf32>
    %13 = arith.addf %10, %12 : vector<16x8xf32>
    %c0_10 = arith.constant 0 : index
    %c0_11 = arith.constant 0 : index
    %14 = vector.load %arg7[%c0_10, %c0_11] : memref<32x8xbf16, #tpu.memory_space<vmem>>, vector<32x8xbf16>
    %cst_12 = arith.constant dense<0.000000e+00> : vector<16x8xf32>
    %15 = tpu.matmul %8, %14, %cst_12 {dimension_numbers = #tpu.dot_dimension_numbers<[1], [0], [0], [1], [0, 0, 1, 1], [], []>} : vector<16x32xbf16>, vector<32x8xbf16>, vector<16x8xf32> -> vector<16x8xf32>
    %c0_13 = arith.constant 0 : index
    %c0_14 = arith.constant 0 : index
    %16 = vector.load %arg8[%c0_13, %c0_14] : memref<1x8xf32, #tpu.memory_space<vmem>>, vector<1x8xf32>
    %17 = vector.broadcast %16 : vector<1x8xf32> to vector<16x8xf32>
    %18 = arith.addf %15, %17 : vector<16x8xf32>
    %cst_15 = arith.constant 5.000000e-01 : f32
    %19 = vector.broadcast %cst_15 : f32 to vector<16x8xf32>
    %20 = arith.mulf %19, %18 : vector<16x8xf32>
    %21 = math.exp %20 : vector<16x8xf32>
    %c0_16 = arith.constant 0 : index
    %c0_17 = arith.constant 0 : index
    %22 = vector.load %arg2[%c0_16, %c0_17] : memref<16x8xf32, #tpu.memory_space<vmem>>, vector<16x8xf32>
    %23 = arith.mulf %22, %21 : vector<16x8xf32>
    %24 = arith.addf %13, %23 : vector<16x8xf32>
    %25 = arith.truncf %24 : vector<16x8xf32> to vector<16x8xbf16>
    %c0_18 = arith.constant 0 : index
    %c0_19 = arith.constant 0 : index
    %26 = vector.load %arg9[%c0_18, %c0_19] : memref<8x32xbf16, #tpu.memory_space<vmem>>, vector<8x32xbf16>
    %cst_20 = arith.constant dense<0.000000e+00> : vector<16x32xf32>
    %27 = tpu.matmul %25, %26, %cst_20 {dimension_numbers = #tpu.dot_dimension_numbers<[1], [0], [0], [1], [0, 0, 1, 1], [], []>} : vector<16x8xbf16>, vector<8x32xbf16>, vector<16x32xf32> -> vector<16x32xf32>
    %c0_21 = arith.constant 0 : index
    %c0_22 = arith.constant 0 : index
    %28 = vector.load %arg10[%c0_21, %c0_22] : memref<1x32xf32, #tpu.memory_space<vmem>>, vector<1x32xf32>
    %29 = vector.broadcast %28 : vector<1x32xf32> to vector<16x32xf32>
    %30 = arith.addf %27, %29 : vector<16x32xf32>
    %31 = math.tanh %30 : vector<16x32xf32>
    %32 = arith.truncf %31 : vector<16x32xf32> to vector<16x32xbf16>
    %c0_23 = arith.constant 0 : index
    %c0_24 = arith.constant 0 : index
    %33 = vector.load %arg11[%c0_23, %c0_24] : memref<32x16xbf16, #tpu.memory_space<vmem>>, vector<32x16xbf16>
    %cst_25 = arith.constant dense<0.000000e+00> : vector<16x16xf32>
    %34 = tpu.matmul %32, %33, %cst_25 {dimension_numbers = #tpu.dot_dimension_numbers<[1], [0], [0], [1], [0, 0, 1, 1], [], []>} : vector<16x32xbf16>, vector<32x16xbf16>, vector<16x16xf32> -> vector<16x16xf32>
    %c0_26 = arith.constant 0 : index
    %c0_27 = arith.constant 0 : index
    %35 = vector.load %arg12[%c0_26, %c0_27] : memref<1x16xf32, #tpu.memory_space<vmem>>, vector<1x16xf32>
    %36 = vector.broadcast %35 : vector<1x16xf32> to vector<16x16xf32>
    %37 = arith.addf %34, %36 : vector<16x16xf32>
    %c0_28 = arith.constant 0 : index
    %c0_29 = arith.constant 0 : index
    %38 = vector.load %arg13[%c0_28, %c0_29] : memref<16x16xf32, #tpu.memory_space<vmem>>, vector<16x16xf32>
    tpu.vector_store %arg13[%c0_28, %c0_29], %37 {strides = array<i32>} : memref<16x16xf32, #tpu.memory_space<vmem>>, vector<16x16xf32>,
    %c0_30 = arith.constant 0 : index
    %c0_31 = arith.constant 0 : index
    %39 = vector.load %arg14[%c0_30, %c0_31] : memref<16x8xf32, #tpu.memory_space<vmem>>, vector<16x8xf32>
    tpu.vector_store %arg14[%c0_30, %c0_31], %13 {strides = array<i32>} : memref<16x8xf32, #tpu.memory_space<vmem>>, vector<16x8xf32>,
    %c0_32 = arith.constant 0 : index
    %c0_33 = arith.constant 0 : index
    %40 = vector.load %arg15[%c0_32, %c0_33] : memref<16x8xf32, #tpu.memory_space<vmem>>, vector<16x8xf32>
    tpu.vector_store %arg15[%c0_32, %c0_33], %18 {strides = array<i32>} : memref<16x8xf32, #tpu.memory_space<vmem>>, vector<16x8xf32>,
    %c0_34 = arith.constant 0 : index
    %c0_35 = arith.constant 0 : index
    %41 = vector.load %arg16[%c0_34, %c0_35] : memref<16x8xf32, #tpu.memory_space<vmem>>, vector<16x8xf32>
    tpu.vector_store %arg16[%c0_34, %c0_35], %24 {strides = array<i32>} : memref<16x8xf32, #tpu.memory_space<vmem>>, vector<16x8xf32>,
    return
  }
  func.func @transform_0(%arg0: i32) -> (i32, i32) {
    %c0_i32 = arith.constant 0 : i32
    %c0_i32_0 = arith.constant 0 : i32
    return %arg0, %c0_i32 : i32, i32
  }
  func.func @transform_1(%arg0: i32) -> (i32, i32) {
    %c0_i32 = arith.constant 0 : i32
    %c0_i32_0 = arith.constant 0 : i32
    return %arg0, %c0_i32 : i32, i32
  }
  func.func @transform_2(%arg0: i32) -> (i32, i32) {
    %c0_i32 = arith.constant 0 : i32
    %c0_i32_0 = arith.constant 0 : i32
    %c0_i32_1 = arith.constant 0 : i32
    return %c0_i32, %c0_i32_0 : i32, i32
  }
  func.func @transform_3(%arg0: i32) -> (i32, i32) {
    %c0_i32 = arith.constant 0 : i32
    %c0_i32_0 = arith.constant 0 : i32
    %c0_i32_1 = arith.constant 0 : i32
    return %c0_i32, %c0_i32_0 : i32, i32
  }
  func.func @transform_4(%arg0: i32) -> (i32, i32) {
    %c0_i32 = arith.constant 0 : i32
    %c0_i32_0 = arith.constant 0 : i32
    %c0_i32_1 = arith.constant 0 : i32
    return %c0_i32, %c0_i32_0 : i32, i32
  }
  func.func @transform_5(%arg0: i32) -> (i32, i32) {
    %c0_i32 = arith.constant 0 : i32
    %c0_i32_0 = arith.constant 0 : i32
    %c0_i32_1 = arith.constant 0 : i32
    return %c0_i32, %c0_i32_0 : i32, i32
  }
  func.func @transform_6(%arg0: i32) -> (i32, i32) {
    %c0_i32 = arith.constant 0 : i32
    %c0_i32_0 = arith.constant 0 : i32
    %c0_i32_1 = arith.constant 0 : i32
    return %c0_i32, %c0_i32_0 : i32, i32
  }
  func.func @transform_7(%arg0: i32) -> (i32, i32) {
    %c0_i32 = arith.constant 0 : i32
    %c0_i32_0 = arith.constant 0 : i32
    %c0_i32_1 = arith.constant 0 : i32
    return %c0_i32, %c0_i32_0 : i32, i32
  }
  func.func @transform_8(%arg0: i32) -> (i32, i32) {
    %c0_i32 = arith.constant 0 : i32
    %c0_i32_0 = arith.constant 0 : i32
    %c0_i32_1 = arith.constant 0 : i32
    return %c0_i32, %c0_i32_0 : i32, i32
  }
  func.func @transform_9(%arg0: i32) -> (i32, i32) {
    %c0_i32 = arith.constant 0 : i32
    %c0_i32_0 = arith.constant 0 : i32
    %c0_i32_1 = arith.constant 0 : i32
    return %c0_i32, %c0_i32_0 : i32, i32
  }
  func.func @transform_10(%arg0: i32) -> (i32, i32) {
    %c0_i32 = arith.constant 0 : i32
    %c0_i32_0 = arith.constant 0 : i32
    %c0_i32_1 = arith.constant 0 : i32
    return %c0_i32, %c0_i32_0 : i32, i32
  }
  func.func @transform_11(%arg0: i32) -> (i32, i32) {
    %c0_i32 = arith.constant 0 : i32
    %c0_i32_0 = arith.constant 0 : i32
    %c0_i32_1 = arith.constant 0 : i32
    return %c0_i32, %c0_i32_0 : i32, i32
  }
  func.func @transform_12(%arg0: i32) -> (i32, i32) {
    %c0_i32 = arith.constant 0 : i32
    %c0_i32_0 = arith.constant 0 : i32
    return %arg0, %c0_i32 : i32, i32
  }
  func.func @transform_13(%arg0: i32) -> (i32, i32) {
    %c0_i32 = arith.constant 0 : i32
    %c0_i32_0 = arith.constant 0 : i32
    return %arg0, %c0_i32 : i32, i32
  }
  func.func @transform_14(%arg0: i32) -> (i32, i32) {
    %c0_i32 = arith.constant 0 : i32
    %c0_i32_0 = arith.constant 0 : i32
    return %arg0, %c0_i32 : i32, i32
  }
  func.func @transform_15(%arg0: i32) -> (i32, i32) {
    %c0_i32 = arith.constant 0 : i32
    %c0_i32_0 = arith.constant 0 : i32
    return %arg0, %c0_i32 : i32, i32
  }
}

module attributes {stable_mosaic.version = 11 : i64} {
  func.func @kernel(%arg0: i32, %arg1: memref<16x16xf32, #tpu.memory_space<vmem>>, %arg2: memref<16x8xf32, #tpu.memory_space<vmem>>, %arg3: memref<16x32xbf16, #tpu.memory_space<vmem>>, %arg4: memref<1x32xf32, #tpu.memory_space<vmem>>, %arg5: memref<32x8xbf16, #tpu.memory_space<vmem>>, %arg6: memref<1x8xf32, #tpu.memory_space<vmem>>, %arg7: memref<32x8xbf16, #tpu.memory_space<vmem>>, %arg8: memref<1x8xf32, #tpu.memory_space<vmem>>, %arg9: memref<8x32xbf16, #tpu.memory_space<vmem>>, %arg10: memref<1x32xf32, #tpu.memory_space<vmem>>, %arg11: memref<32x16xbf16, #tpu.memory_space<vmem>>, %arg12: memref<1x16xf32, #tpu.memory_space<vmem>>, %arg13: memref<16x16xf32, #tpu.memory_space<vmem>>, %arg14: memref<16x8xf32, #tpu.memory_space<vmem>>, %arg15: memref<16x8xf32, #tpu.memory_space<vmem>>, %arg16: memref<16x8xf32, #tpu.memory_space<vmem>>) attributes {dimension_semantics = [#tpu.dimension_semantics<parallel>], iteration_bounds = array<i64: 2>, scalar_prefetch = 0 : i64, scratch_operands = 0 : i64, tpu.core_type = #tpu.core_type<tc>, window_params = [{transform_indices = @transform_0, window_bounds = array<i64: 16, 16>}, {transform_indices = @transform_1, window_bounds = array<i64: 16, 8>}, {pipeline_mode = #tpu.pipeline_mode<synchronous>, transform_indices = @transform_2, window_bounds = array<i64: 16, 32>}, {pipeline_mode = #tpu.pipeline_mode<synchronous>, transform_indices = @transform_3, window_bounds = array<i64: 1, 32>}, {pipeline_mode = #tpu.pipeline_mode<synchronous>, transform_indices = @transform_4, window_bounds = array<i64: 32, 8>}, {pipeline_mode = #tpu.pipeline_mode<synchronous>, transform_indices = @transform_5, window_bounds = array<i64: 1, 8>}, {pipeline_mode = #tpu.pipeline_mode<synchronous>, transform_indices = @transform_6, window_bounds = array<i64: 32, 8>}, {pipeline_mode = #tpu.pipeline_mode<synchronous>, transform_indices = @transform_7, window_bounds = array<i64: 1, 8>}, {pipeline_mode = #tpu.pipeline_mode<synchronous>, transform_indices = @transform_8, window_bounds = array<i64: 8, 32>}, {pipeline_mode = #tpu.pipeline_mode<synchronous>, transform_indices = @transform_9, window_bounds = array<i64: 1, 32>}, {pipeline_mode = #tpu.pipeline_mode<synchronous>, transform_indices = @transform_10, window_bounds = array<i64: 32, 16>}, {pipeline_mode = #tpu.pipeline_mode<synchronous>, transform_indices = @transform_11, window_bounds = array<i64: 1, 16>}, {transform_indices = @transform_12, window_bounds = array<i64: 16, 16>}, {transform_indices = @transform_13, window_bounds = array<i64: 16, 8>}, {transform_indices = @transform_14, window_bounds = array<i64: 16, 8>}, {transform_indices = @transform_15, window_bounds = array<i64: 16, 8>}]} {
    %c0 = arith.constant 0 : index
    %c0_0 = arith.constant 0 : index
    %0 = vector.load %arg1[%c0, %c0_0] : memref<16x16xf32, #tpu.memory_space<vmem>>, vector<16x16xf32>
    %1 = arith.truncf %0 : vector<16x16xf32> to vector<16x16xbf16>
    %c0_1 = arith.constant 0 : index
    %c0_2 = arith.constant 0 : index
    %2 = vector.load %arg3[%c0_1, %c0_2] : memref<16x32xbf16, #tpu.memory_space<vmem>>, vector<16x32xbf16>
    %cst = arith.constant dense<0.000000e+00> : vector<16x32xf32>
    %3 = tpu.matmul %1, %2, %cst {dimension_numbers = #tpu.dot_dimension_numbers<[1], [0], [0], [1], [0, 0, 1, 1], [], []>} : vector<16x16xbf16>, vector<16x32xbf16>, vector<16x32xf32> -> vector<16x32xf32>
    %c0_3 = arith.constant 0 : index
    %c0_4 = arith.constant 0 : index
    %4 = vector.load %arg4[%c0_3, %c0_4] : memref<1x32xf32, #tpu.memory_space<vmem>>, vector<1x32xf32>
    %5 = vector.broadcast %4 : vector<1x32xf32> to vector<16x32xf32>
    %6 = arith.addf %3, %5 : vector<16x32xf32>
    %7 = math.tanh %6 : vector<16x32xf32>
    %8 = arith.truncf %7 : vector<16x32xf32> to vector<16x32xbf16>
    %c0_5 = arith.constant 0 : index
    %c0_6 = arith.constant 0 : index
    %9 = vector.load %arg5[%c0_5, %c0_6] : memref<32x8xbf16, #tpu.memory_space<vmem>>, vector<32x8xbf16>
    %cst_7 = arith.constant dense<0.000000e+00> : vector<16x8xf32>
    %10 = tpu.matmul %8, %9, %cst_7 {dimension_numbers = #tpu.dot_dimension_numbers<[1], [0], [0], [1], [0, 0, 1, 1], [], []>} : vector<16x32xbf16>, vector<32x8xbf16>, vector<16x8xf32> -> vector<16x8xf32>
    %c0_8 = arith.constant 0 : index
    %c0_9 = arith.constant 0 : index
    %11 = vector.load %arg6[%c0_8, %c0_9] : memref<1x8xf32, #tpu.memory_space<vmem>>, vector<1x8xf32>
    %12 = vector.broadcast %11 : vector<1x8xf32> to vector<16x8xf32>
    %13 = arith.addf %10, %12 : vector<16x8xf32>
    %c0_10 = arith.constant 0 : index
    %c0_11 = arith.constant 0 : index
    %14 = vector.load %arg7[%c0_10, %c0_11] : memref<32x8xbf16, #tpu.memory_space<vmem>>, vector<32x8xbf16>
    %cst_12 = arith.constant dense<0.000000e+00> : vector<16x8xf32>
    %15 = tpu.matmul %8, %14, %cst_12 {dimension_numbers = #tpu.dot_dimension_numbers<[1], [0], [0], [1], [0, 0, 1, 1], [], []>} : vector<16x32xbf16>, vector<32x8xbf16>, vector<16x8xf32> -> vector<16x8xf32>
    %c0_13 = arith.constant 0 : index
    %c0_14 = arith.constant 0 : index
    %16 = vector.load %arg8[%c0_13, %c0_14] : memref<1x8xf32, #tpu.memory_space<vmem>>, vector<1x8xf32>
    %17 = vector.broadcast %16 : vector<1x8xf32> to vector<16x8xf32>
    %18 = arith.addf %15, %17 : vector<16x8xf32>
    %cst_15 = arith.constant 5.000000e-01 : f32
    %19 = vector.broadcast %cst_15 : f32 to vector<16x8xf32>
    %20 = arith.mulf %19, %18 : vector<16x8xf32>
    %21 = math.exp %20 : vector<16x8xf32>
    %c0_16 = arith.constant 0 : index
    %c0_17 = arith.constant 0 : index
    %22 = vector.load %arg2[%c0_16, %c0_17] : memref<16x8xf32, #tpu.memory_space<vmem>>, vector<16x8xf32>
    %23 = arith.mulf %22, %21 : vector<16x8xf32>
    %24 = arith.addf %13, %23 : vector<16x8xf32>
    %25 = arith.truncf %24 : vector<16x8xf32> to vector<16x8xbf16>
    %c0_18 = arith.constant 0 : index
    %c0_19 = arith.constant 0 : index
    %26 = vector.load %arg9[%c0_18, %c0_19] : memref<8x32xbf16, #tpu.memory_space<vmem>>, vector<8x32xbf16>
    %cst_20 = arith.constant dense<0.000000e+00> : vector<16x32xf32>
    %27 = tpu.matmul %25, %26, %cst_20 {dimension_numbers = #tpu.dot_dimension_numbers<[1], [0], [0], [1], [0, 0, 1, 1], [], []>} : vector<16x8xbf16>, vector<8x32xbf16>, vector<16x32xf32> -> vector<16x32xf32>
    %c0_21 = arith.constant 0 : index
    %c0_22 = arith.constant 0 : index
    %28 = vector.load %arg10[%c0_21, %c0_22] : memref<1x32xf32, #tpu.memory_space<vmem>>, vector<1x32xf32>
    %29 = vector.broadcast %28 : vector<1x32xf32> to vector<16x32xf32>
    %30 = arith.addf %27, %29 : vector<16x32xf32>
    %31 = math.tanh %30 : vector<16x32xf32>
    %32 = arith.truncf %31 : vector<16x32xf32> to vector<16x32xbf16>
    %c0_23 = arith.constant 0 : index
    %c0_24 = arith.constant 0 : index
    %33 = vector.load %arg11[%c0_23, %c0_24] : memref<32x16xbf16, #tpu.memory_space<vmem>>, vector<32x16xbf16>
    %cst_25 = arith.constant dense<0.000000e+00> : vector<16x16xf32>
    %34 = tpu.matmul %32, %33, %cst_25 {dimension_numbers = #tpu.dot_dimension_numbers<[1], [0], [0], [1], [0, 0, 1, 1], [], []>} : vector<16x32xbf16>, vector<32x16xbf16>, vector<16x16xf32> -> vector<16x16xf32>
    %c0_26 = arith.constant 0 : index
    %c0_27 = arith.constant 0 : index
    %35 = vector.load %arg12[%c0_26, %c0_27] : memref<1x16xf32, #tpu.memory_space<vmem>>, vector<1x16xf32>
    %36 = vector.broadcast %35 : vector<1x16xf32> to vector<16x16xf32>
    %37 = arith.addf %34, %36 : vector<16x16xf32>
    %c0_28 = arith.constant 0 : index
    %c0_29 = arith.constant 0 : index
    %38 = vector.load %arg13[%c0_28, %c0_29] : memref<16x16xf32, #tpu.memory_space<vmem>>, vector<16x16xf32>
    tpu.vector_store %arg13[%c0_28, %c0_29], %37 {strides = array<i32>} : memref<16x16xf32, #tpu.memory_space<vmem>>, vector<16x16xf32>,
    %c0_30 = arith.constant 0 : index
    %c0_31 = arith.constant 0 : index
    %39 = vector.load %arg14[%c0_30, %c0_31] : memref<16x8xf32, #tpu.memory_space<vmem>>, vector<16x8xf32>
    tpu.vector_store %arg14[%c0_30, %c0_31], %13 {strides = array<i32>} : memref<16x8xf32, #tpu.memory_space<vmem>>, vector<16x8xf32>,
    %c0_32 = arith.constant 0 : index
    %c0_33 = arith.constant 0 : index
    %40 = vector.load %arg15[%c0_32, %c0_33] : memref<16x8xf32, #tpu.memory_space<vmem>>, vector<16x8xf32>
    tpu.vector_store %arg15[%c0_32, %c0_33], %18 {strides = array<i32>} : memref<16x8xf32, #tpu.memory_space<vmem>>, vector<16x8xf32>,
    %c0_34 = arith.constant 0 : index
    %c0_35 = arith.constant 0 : index
    %41 = vector.load %arg16[%c0_34, %c0_35] : memref<16x8xf32, #tpu.memory_space<vmem>>, vector<16x8xf32>
    tpu.vector_store %arg16[%c0_34, %c0_35], %24 {strides = array<i32>} : memref<16x8xf32, #tpu.memory_space<vmem>>, vector<16x8xf32>,
    return
  }
  func.func @transform_0(%arg0: i32) -> (i32, i32) {
    %c0_i32 = arith.constant 0 : i32
    %c0_i32_0 = arith.constant 0 : i32
    return %arg0, %c0_i32 : i32, i32
  }
  func.func @transform_1(%arg0: i32) -> (i32, i32) {
    %c0_i32 = arith.constant 0 : i32
    %c0_i32_0 = arith.constant 0 : i32
    return %arg0, %c0_i32 : i32, i32
  }
  func.func @transform_2(%arg0: i32) -> (i32, i32) {
    %c0_i32 = arith.constant 0 : i32
    %c0_i32_0 = arith.constant 0 : i32
    %c0_i32_1 = arith.constant 0 : i32
    return %c0_i32, %c0_i32_0 : i32, i32
  }
  func.func @transform_3(%arg0: i32) -> (i32, i32) {
    %c0_i32 = arith.constant 0 : i32
    %c0_i32_0 = arith.constant 0 : i32
    %c0_i32_1 = arith.constant 0 : i32
    return %c0_i32, %c0_i32_0 : i32, i32
  }
  func.func @transform_4(%arg0: i32) -> (i32, i32) {
    %c0_i32 = arith.constant 0 : i32
    %c0_i32_0 = arith.constant 0 : i32
    %c0_i32_1 = arith.constant 0 : i32
    return %c0_i32, %c0_i32_0 : i32, i32
  }
  func.func @transform_5(%arg0: i32) -> (i32, i32) {
    %c0_i32 = arith.constant 0 : i32
    %c0_i32_0 = arith.constant 0 : i32
    %c0_i32_1 = arith.constant 0 : i32
    return %c0_i32, %c0_i32_0 : i32, i32
  }
  func.func @transform_6(%arg0: i32) -> (i32, i32) {
    %c0_i32 = arith.constant 0 : i32
    %c0_i32_0 = arith.constant 0 : i32
    %c0_i32_1 = arith.constant 0 : i32
    return %c0_i32, %c0_i32_0 : i32, i32
  }
  func.func @transform_7(%arg0: i32) -> (i32, i32) {
    %c0_i32 = arith.constant 0 : i32
    %c0_i32_0 = arith.constant 0 : i32
    %c0_i32_1 = arith.constant 0 : i32
    return %c0_i32, %c0_i32_0 : i32, i32
  }
  func.func @transform_8(%arg0: i32) -> (i32, i32) {
    %c0_i32 = arith.constant 0 : i32
    %c0_i32_0 = arith.constant 0 : i32
    %c0_i32_1 = arith.constant 0 : i32
    return %c0_i32, %c0_i32_0 : i32, i32
  }
  func.func @transform_9(%arg0: i32) -> (i32, i32) {
    %c0_i32 = arith.constant 0 : i32
    %c0_i32_0 = arith.constant 0 : i32
    %c0_i32_1 = arith.constant 0 : i32
    return %c0_i32, %c0_i32_0 : i32, i32
  }
  func.func @transform_10(%arg0: i32) -> (i32, i32) {
    %c0_i32 = arith.constant 0 : i32
    %c0_i32_0 = arith.constant 0 : i32
    %c0_i32_1 = arith.constant 0 : i32
    return %c0_i32, %c0_i32_0 : i32, i32
  }
  func.func @transform_11(%arg0: i32) -> (i32, i32) {
    %c0_i32 = arith.constant 0 : i32
    %c0_i32_0 = arith.constant 0 : i32
    %c0_i32_1 = arith.constant 0 : i32
    return %c0_i32, %c0_i32_0 : i32, i32
  }
  func.func @transform_12(%arg0: i32) -> (i32, i32) {
    %c0_i32 = arith.constant 0 : i32
    %c0_i32_0 = arith.constant 0 : i32
    return %arg0, %c0_i32 : i32, i32
  }
  func.func @transform_13(%arg0: i32) -> (i32, i32) {
    %c0_i32 = arith.constant 0 : i32
    %c0_i32_0 = arith.constant 0 : i32
    return %arg0, %c0_i32 : i32, i32
  }
  func.func @transform_14(%arg0: i32) -> (i32, i32) {
    %c0_i32 = arith.constant 0 : i32
    %c0_i32_0 = arith.constant 0 : i32
    return %arg0, %c0_i32 : i32, i32
  }
  func.func @transform_15(%arg0: i32) -> (i32, i32) {
    %c0_i32 = arith.constant 0 : i32
    %c0_i32_0 = arith.constant 0 : i32
    return %arg0, %c0_i32 : i32, i32
  }
}

</mosaic_0001>

<llo_original>
// kernel: tpu_custom_call.1
$region0: #{tpu_custom_call.1}
  #allocation0 [shape = 'u32[]', space=smem, size = 0x4, offset = 0x4, fixed_abs, tag = 'smem constant byte address 0x4 - core index']
  #allocation1 [shape = 'u32[144,128]{1,0:T(1,128)}', space=vmem, size = 0x12000, scoped, tag = 'internal scratch']
  %s0 = inlined_call_operand.vmem [shape: f32[32,16], index: 0, kind: input, shape index: {}]
  %s1 = inlined_call_operand.vmem [shape: f32[32,8], index: 1, kind: input, shape index: {}]
  %s2 = inlined_call_operand.vmem [shape: bf16[16,32], index: 2, kind: input, shape index: {}]
  %s3 = inlined_call_operand.vmem [shape: f32[1,32], index: 3, kind: input, shape index: {}]
  %s4 = inlined_call_operand.vmem [shape: bf16[32,8], index: 4, kind: input, shape index: {}]
  %s5 = inlined_call_operand.vmem [shape: f32[1,8], index: 5, kind: input, shape index: {}]
  %s6 = inlined_call_operand.vmem [shape: bf16[32,8], index: 6, kind: input, shape index: {}]
  %s7 = inlined_call_operand.vmem [shape: f32[1,8], index: 7, kind: input, shape index: {}]
  %s8 = inlined_call_operand.vmem [shape: bf16[8,32], index: 8, kind: input, shape index: {}]
  %s9 = inlined_call_operand.vmem [shape: f32[1,32], index: 9, kind: input, shape index: {}]
  %s10 = inlined_call_operand.vmem [shape: bf16[32,16], index: 10, kind: input, shape index: {}]
  %s11 = inlined_call_operand.vmem [shape: f32[1,16], index: 11, kind: input, shape index: {}]
  %s12 = inlined_call_operand.vmem [shape: f32[32,16], index: 12, kind: output, shape index: {0}]
  %s13 = inlined_call_operand.vmem [shape: f32[32,8], index: 13, kind: output, shape index: {1}]
  %s14 = inlined_call_operand.vmem [shape: f32[32,8], index: 14, kind: output, shape index: {2}]
  %s15 = inlined_call_operand.vmem [shape: f32[32,8], index: 15, kind: output, shape index: {3}]
  %16 = xla_tuple %s12, %s13, %s14, %s15
  %s17 = sld [smem:[#allocation0]]
  $region105: #{tpu_custom_call.1} parent=0
    _
  %s19 = ssub.s32 1, %s17
  %s20 = scalar_select 0, %s19, %s17
  loop: start=0, step=1, limit=4
  $region2: #{tpu_custom_call.1} parent=0 // loop_pre_header
    _
  $region3: #{tpu_custom_call.1} parent=0 // loop_header
    %s22 = sphi 0, %s26
    %p23 = scmp.ge.s32.totalorder %s22, 4
    %s32 = sphi 0, %s34
    %s35 = sphi 0, %s32
    %s36 = sphi 0, %s35
    %s52 = sphi 0, %s36
    %s58 = sphi 0, %s60
    %s61 = sphi 0, %s58
    %s62 = sphi 0, %s61
    %s78 = sphi 0, %s62
    %s82 = sphi 0, %s82
    %s84 = sphi 0, %s82
    %s85 = sphi 0, %s84
    %s99 = sphi 0, %s85
    %s103 = sphi 0, %s103
    %s105 = sphi 0, %s103
    %s106 = sphi 0, %s105
    %s120 = sphi 0, %s106
    %s124 = sphi 0, %s124
    %s126 = sphi 0, %s124
    %s127 = sphi 0, %s126
    %s141 = sphi 0, %s127
    %s145 = sphi 0, %s145
    %s147 = sphi 0, %s145
    %s148 = sphi 0, %s147
    %s162 = sphi 0, %s148
    %s166 = sphi 0, %s166
    %s168 = sphi 0, %s166
    %s169 = sphi 0, %s168
    %s183 = sphi 0, %s169
    %s187 = sphi 0, %s187
    %s189 = sphi 0, %s187
    %s190 = sphi 0, %s189
    %s204 = sphi 0, %s190
    %s208 = sphi 0, %s208
    %s210 = sphi 0, %s208
    %s211 = sphi 0, %s210
    %s225 = sphi 0, %s211
    %s229 = sphi 0, %s229
    %s231 = sphi 0, %s229
    %s232 = sphi 0, %s231
    %s246 = sphi 0, %s232
    %s250 = sphi 0, %s250
    %s252 = sphi 0, %s250
    %s253 = sphi 0, %s252
    %s267 = sphi 0, %s253
    %s271 = sphi 0, %s271
    %s273 = sphi 0, %s271
    %s274 = sphi 0, %s273
    %s288 = sphi 0, %s274
    %s294 = sphi 0, %s296
    %s297 = sphi 0, %s294
    %s298 = sphi 0, %s297
    %s314 = sphi 0, %s298
    %s320 = sphi 0, %s322
    %s323 = sphi 0, %s320
    %s324 = sphi 0, %s323
    %s340 = sphi 0, %s324
    %s346 = sphi 0, %s348
    %s349 = sphi 0, %s346
    %s350 = sphi 0, %s349
    %s366 = sphi 0, %s350
    %s372 = sphi 0, %s374
    %s375 = sphi 0, %s372
    %s376 = sphi 0, %s375
    %s392 = sphi 0, %s376
  $region4: #{tpu_custom_call.1} parent=0 // loop_header_branch
    %25 = sbr.rel (%p23) target = $region8
  $region5: #{tpu_custom_call.1} parent=0 // loop_body
    %s27 = ssub.s32 %s22, 1
    %s28 = ssub.s32 %s22, 2
    %s29 = sadd.s32 %s22, 1
    %s30 = ssub.s32 %s22, %s29
    %p31 = scmp.eq.s32.totalorder %s30, 0
    %s33 = sadd.s32 %s32, 1
    %s34 = scalar_select %p31, %s32, %s33
    %p37 = pneg %p31
    %p38 = scmp.eq.s32.totalorder %s22, 1
    %p39 = por %p37, %p38
    %p40 = scmp.ne.s32.totalorder %s32, %s35
    %p41 = scmp.eq.s32.totalorder %s22, 0
    %p42 = por %p40, %p41
    %p43 = scmp.ne.s32.totalorder %s32, %s35
    %p44 = scmp.eq.s32.totalorder %s27, 1
    %p45 = por %p43, %p44
    %p46 = scmp.ne.s32.totalorder %s35, %s36
    %p47 = scmp.eq.s32.totalorder %s27, 0
    %p48 = por %p46, %p47
    %p49 = scmp.ne.s32.totalorder %s35, %s36
    %p50 = scmp.eq.s32.totalorder %s28, 1
    %p51 = por %p49, %p50
    %p53 = scmp.ne.s32.totalorder %s36, %s52
    %p54 = scmp.eq.s32.totalorder %s28, 0
    %p55 = por %p53, %p54
    %s56 = ssub.s32 %s22, %s29
    %p57 = scmp.eq.s32.totalorder %s56, 0
    %s59 = sadd.s32 %s58, 1
    %s60 = scalar_select %p57, %s58, %s59
    %p63 = pneg %p57
    %p64 = scmp.eq.s32.totalorder %s22, 1
    %p65 = por %p63, %p64
    %p66 = scmp.ne.s32.totalorder %s58, %s61
    %p67 = scmp.eq.s32.totalorder %s22, 0
    %p68 = por %p66, %p67
    %p69 = scmp.ne.s32.totalorder %s58, %s61
    %p70 = scmp.eq.s32.totalorder %s27, 1
    %p71 = por %p69, %p70
    %p72 = scmp.ne.s32.totalorder %s61, %s62
    %p73 = scmp.eq.s32.totalorder %s27, 0
    %p74 = por %p72, %p73
    %p75 = scmp.ne.s32.totalorder %s61, %s62
    %p76 = scmp.eq.s32.totalorder %s28, 1
    %p77 = por %p75, %p76
    %p79 = scmp.ne.s32.totalorder %s62, %s78
    %p80 = scmp.eq.s32.totalorder %s28, 0
    %p81 = por %p79, %p80
    %s83 = sadd.s32 %s82, 1
    %p86 = scmp.eq.s32.totalorder %s22, 1
    %p87 = scmp.ne.s32.totalorder %s82, %s84
    %p88 = scmp.eq.s32.totalorder %s22, 0
    %p89 = por %p87, %p88
    %p90 = scmp.ne.s32.totalorder %s82, %s84
    %p91 = scmp.eq.s32.totalorder %s27, 1
    %p92 = por %p90, %p91
    %p93 = scmp.ne.s32.totalorder %s84, %s85
    %p94 = scmp.eq.s32.totalorder %s27, 0
    %p95 = por %p93, %p94
    %p96 = scmp.ne.s32.totalorder %s84, %s85
    %p97 = scmp.eq.s32.totalorder %s28, 1
    %p98 = por %p96, %p97
    %p100 = scmp.ne.s32.totalorder %s85, %s99
    %p101 = scmp.eq.s32.totalorder %s28, 0
    %p102 = por %p100, %p101
    %s104 = sadd.s32 %s103, 1
    %p107 = scmp.eq.s32.totalorder %s22, 1
    %p108 = scmp.ne.s32.totalorder %s103, %s105
    %p109 = scmp.eq.s32.totalorder %s22, 0
    %p110 = por %p108, %p109
    %p111 = scmp.ne.s32.totalorder %s103, %s105
    %p112 = scmp.eq.s32.totalorder %s27, 1
    %p113 = por %p111, %p112
    %p114 = scmp.ne.s32.totalorder %s105, %s106
    %p115 = scmp.eq.s32.totalorder %s27, 0
    %p116 = por %p114, %p115
    %p117 = scmp.ne.s32.totalorder %s105, %s106
    %p118 = scmp.eq.s32.totalorder %s28, 1
    %p119 = por %p117, %p118
    %p121 = scmp.ne.s32.totalorder %s106, %s120
    %p122 = scmp.eq.s32.totalorder %s28, 0
    %p123 = por %p121, %p122
    %s125 = sadd.s32 %s124, 1
    %p128 = scmp.eq.s32.totalorder %s22, 1
    %p129 = scmp.ne.s32.totalorder %s124, %s126
    %p130 = scmp.eq.s32.totalorder %s22, 0
    %p131 = por %p129, %p130
    %p132 = scmp.ne.s32.totalorder %s124, %s126
    %p133 = scmp.eq.s32.totalorder %s27, 1
    %p134 = por %p132, %p133
    %p135 = scmp.ne.s32.totalorder %s126, %s127
    %p136 = scmp.eq.s32.totalorder %s27, 0
    %p137 = por %p135, %p136
    %p138 = scmp.ne.s32.totalorder %s126, %s127
    %p139 = scmp.eq.s32.totalorder %s28, 1
    %p140 = por %p138, %p139
    %p142 = scmp.ne.s32.totalorder %s127, %s141
    %p143 = scmp.eq.s32.totalorder %s28, 0
    %p144 = por %p142, %p143
    %s146 = sadd.s32 %s145, 1
    %p149 = scmp.eq.s32.totalorder %s22, 1
    %p150 = scmp.ne.s32.totalorder %s145, %s147
    %p151 = scmp.eq.s32.totalorder %s22, 0
    %p152 = por %p150, %p151
    %p153 = scmp.ne.s32.totalorder %s145, %s147
    %p154 = scmp.eq.s32.totalorder %s27, 1
    %p155 = por %p153, %p154
    %p156 = scmp.ne.s32.totalorder %s147, %s148
    %p157 = scmp.eq.s32.totalorder %s27, 0
    %p158 = por %p156, %p157
    %p159 = scmp.ne.s32.totalorder %s147, %s148
    %p160 = scmp.eq.s32.totalorder %s28, 1
    %p161 = por %p159, %p160
    %p163 = scmp.ne.s32.totalorder %s148, %s162
    %p164 = scmp.eq.s32.totalorder %s28, 0
    %p165 = por %p163, %p164
    %s167 = sadd.s32 %s166, 1
    %p170 = scmp.eq.s32.totalorder %s22, 1
    %p171 = scmp.ne.s32.totalorder %s166, %s168
    %p172 = scmp.eq.s32.totalorder %s22, 0
    %p173 = por %p171, %p172
    %p174 = scmp.ne.s32.totalorder %s166, %s168
    %p175 = scmp.eq.s32.totalorder %s27, 1
    %p176 = por %p174, %p175
    %p177 = scmp.ne.s32.totalorder %s168, %s169
    %p178 = scmp.eq.s32.totalorder %s27, 0
    %p179 = por %p177, %p178
    %p180 = scmp.ne.s32.totalorder %s168, %s169
    %p181 = scmp.eq.s32.totalorder %s28, 1
    %p182 = por %p180, %p181
    %p184 = scmp.ne.s32.totalorder %s169, %s183
    %p185 = scmp.eq.s32.totalorder %s28, 0
    %p186 = por %p184, %p185
    %s188 = sadd.s32 %s187, 1
    %p191 = scmp.eq.s32.totalorder %s22, 1
    %p192 = scmp.ne.s32.totalorder %s187, %s189
    %p193 = scmp.eq.s32.totalorder %s22, 0
    %p194 = por %p192, %p193
    %p195 = scmp.ne.s32.totalorder %s187, %s189
    %p196 = scmp.eq.s32.totalorder %s27, 1
    %p197 = por %p195, %p196
    %p198 = scmp.ne.s32.totalorder %s189, %s190
    %p199 = scmp.eq.s32.totalorder %s27, 0
    %p200 = por %p198, %p199
    %p201 = scmp.ne.s32.totalorder %s189, %s190
    %p202 = scmp.eq.s32.totalorder %s28, 1
    %p203 = por %p201, %p202
    %p205 = scmp.ne.s32.totalorder %s190, %s204
    %p206 = scmp.eq.s32.totalorder %s28, 0
    %p207 = por %p205, %p206
    %s209 = sadd.s32 %s208, 1
    %p212 = scmp.eq.s32.totalorder %s22, 1
    %p213 = scmp.ne.s32.totalorder %s208, %s210
    %p214 = scmp.eq.s32.totalorder %s22, 0
    %p215 = por %p213, %p214
    %p216 = scmp.ne.s32.totalorder %s208, %s210
    %p217 = scmp.eq.s32.totalorder %s27, 1
    %p218 = por %p216, %p217
    %p219 = scmp.ne.s32.totalorder %s210, %s211
    %p220 = scmp.eq.s32.totalorder %s27, 0
    %p221 = por %p219, %p220
    %p222 = scmp.ne.s32.totalorder %s210, %s211
    %p223 = scmp.eq.s32.totalorder %s28, 1
    %p224 = por %p222, %p223
    %p226 = scmp.ne.s32.totalorder %s211, %s225
    %p227 = scmp.eq.s32.totalorder %s28, 0
    %p228 = por %p226, %p227
    %s230 = sadd.s32 %s229, 1
    %p233 = scmp.eq.s32.totalorder %s22, 1
    %p234 = scmp.ne.s32.totalorder %s229, %s231
    %p235 = scmp.eq.s32.totalorder %s22, 0
    %p236 = por %p234, %p235
    %p237 = scmp.ne.s32.totalorder %s229, %s231
    %p238 = scmp.eq.s32.totalorder %s27, 1
    %p239 = por %p237, %p238
    %p240 = scmp.ne.s32.totalorder %s231, %s232
    %p241 = scmp.eq.s32.totalorder %s27, 0
    %p242 = por %p240, %p241
    %p243 = scmp.ne.s32.totalorder %s231, %s232
    %p244 = scmp.eq.s32.totalorder %s28, 1
    %p245 = por %p243, %p244
    %p247 = scmp.ne.s32.totalorder %s232, %s246
    %p248 = scmp.eq.s32.totalorder %s28, 0
    %p249 = por %p247, %p248
    %s251 = sadd.s32 %s250, 1
    %p254 = scmp.eq.s32.totalorder %s22, 1
    %p255 = scmp.ne.s32.totalorder %s250, %s252
    %p256 = scmp.eq.s32.totalorder %s22, 0
    %p257 = por %p255, %p256
    %p258 = scmp.ne.s32.totalorder %s250, %s252
    %p259 = scmp.eq.s32.totalorder %s27, 1
    %p260 = por %p258, %p259
    %p261 = scmp.ne.s32.totalorder %s252, %s253
    %p262 = scmp.eq.s32.totalorder %s27, 0
    %p263 = por %p261, %p262
    %p264 = scmp.ne.s32.totalorder %s252, %s253
    %p265 = scmp.eq.s32.totalorder %s28, 1
    %p266 = por %p264, %p265
    %p268 = scmp.ne.s32.totalorder %s253, %s267
    %p269 = scmp.eq.s32.totalorder %s28, 0
    %p270 = por %p268, %p269
    %s272 = sadd.s32 %s271, 1
    %p275 = scmp.eq.s32.totalorder %s22, 1
    %p276 = scmp.ne.s32.totalorder %s271, %s273
    %p277 = scmp.eq.s32.totalorder %s22, 0
    %p278 = por %p276, %p277
    %p279 = scmp.ne.s32.totalorder %s271, %s273
    %p280 = scmp.eq.s32.totalorder %s27, 1
    %p281 = por %p279, %p280
    %p282 = scmp.ne.s32.totalorder %s273, %s274
    %p283 = scmp.eq.s32.totalorder %s27, 0
    %p284 = por %p282, %p283
    %p285 = scmp.ne.s32.totalorder %s273, %s274
    %p286 = scmp.eq.s32.totalorder %s28, 1
    %p287 = por %p285, %p286
    %p289 = scmp.ne.s32.totalorder %s274, %s288
    %p290 = scmp.eq.s32.totalorder %s28, 0
    %p291 = por %p289, %p290
    %s292 = ssub.s32 %s22, %s29
    %p293 = scmp.eq.s32.totalorder %s292, 0
    %s295 = sadd.s32 %s294, 1
    %s296 = scalar_select %p293, %s294, %s295
    %p299 = pneg %p293
    %p300 = scmp.eq.s32.totalorder %s22, 1
    %p301 = por %p299, %p300
    %p302 = scmp.ne.s32.totalorder %s294, %s297
    %p303 = scmp.eq.s32.totalorder %s22, 0
    %p304 = por %p302, %p303
    %p305 = scmp.ne.s32.totalorder %s294, %s297
    %p306 = scmp.eq.s32.totalorder %s27, 1
    %p307 = por %p305, %p306
    %p308 = scmp.ne.s32.totalorder %s297, %s298
    %p309 = scmp.eq.s32.totalorder %s27, 0
    %p310 = por %p308, %p309
    %p311 = scmp.ne.s32.totalorder %s297, %s298
    %p312 = scmp.eq.s32.totalorder %s28, 1
    %p313 = por %p311, %p312
    %p315 = scmp.ne.s32.totalorder %s298, %s314
    %p316 = scmp.eq.s32.totalorder %s28, 0
    %p317 = por %p315, %p316
    %s318 = ssub.s32 %s22, %s29
    %p319 = scmp.eq.s32.totalorder %s318, 0
    %s321 = sadd.s32 %s320, 1
    %s322 = scalar_select %p319, %s320, %s321
    %p325 = pneg %p319
    %p326 = scmp.eq.s32.totalorder %s22, 1
    %p327 = por %p325, %p326
    %p328 = scmp.ne.s32.totalorder %s320, %s323
    %p329 = scmp.eq.s32.totalorder %s22, 0
    %p330 = por %p328, %p329
    %p331 = scmp.ne.s32.totalorder %s320, %s323
    %p332 = scmp.eq.s32.totalorder %s27, 1
    %p333 = por %p331, %p332
    %p334 = scmp.ne.s32.totalorder %s323, %s324
    %p335 = scmp.eq.s32.totalorder %s27, 0
    %p336 = por %p334, %p335
    %p337 = scmp.ne.s32.totalorder %s323, %s324
    %p338 = scmp.eq.s32.totalorder %s28, 1
    %p339 = por %p337, %p338
    %p341 = scmp.ne.s32.totalorder %s324, %s340
    %p342 = scmp.eq.s32.totalorder %s28, 0
    %p343 = por %p341, %p342
    %s344 = ssub.s32 %s22, %s29
    %p345 = scmp.eq.s32.totalorder %s344, 0
    %s347 = sadd.s32 %s346, 1
    %s348 = scalar_select %p345, %s346, %s347
    %p351 = pneg %p345
    %p352 = scmp.eq.s32.totalorder %s22, 1
    %p353 = por %p351, %p352
    %p354 = scmp.ne.s32.totalorder %s346, %s349
    %p355 = scmp.eq.s32.totalorder %s22, 0
    %p356 = por %p354, %p355
    %p357 = scmp.ne.s32.totalorder %s346, %s349
    %p358 = scmp.eq.s32.totalorder %s27, 1
    %p359 = por %p357, %p358
    %p360 = scmp.ne.s32.totalorder %s349, %s350
    %p361 = scmp.eq.s32.totalorder %s27, 0
    %p362 = por %p360, %p361
    %p363 = scmp.ne.s32.totalorder %s349, %s350
    %p364 = scmp.eq.s32.totalorder %s28, 1
    %p365 = por %p363, %p364
    %p367 = scmp.ne.s32.totalorder %s350, %s366
    %p368 = scmp.eq.s32.totalorder %s28, 0
    %p369 = por %p367, %p368
    %s370 = ssub.s32 %s22, %s29
    %p371 = scmp.eq.s32.totalorder %s370, 0
    %s373 = sadd.s32 %s372, 1
    %s374 = scalar_select %p371, %s372, %s373
    %p377 = pneg %p371
    %p378 = scmp.eq.s32.totalorder %s22, 1
    %p379 = por %p377, %p378
    %p380 = scmp.ne.s32.totalorder %s372, %s375
    %p381 = scmp.eq.s32.totalorder %s22, 0
    %p382 = por %p380, %p381
    %p383 = scmp.ne.s32.totalorder %s372, %s375
    %p384 = scmp.eq.s32.totalorder %s27, 1
    %p385 = por %p383, %p384
    %p386 = scmp.ne.s32.totalorder %s375, %s376
    %p387 = scmp.eq.s32.totalorder %s27, 0
    %p388 = por %p386, %p387
    %p389 = scmp.ne.s32.totalorder %s375, %s376
    %p390 = scmp.eq.s32.totalorder %s28, 1
    %p391 = por %p389, %p390
    %p393 = scmp.ne.s32.totalorder %s376, %s392
    %p394 = scmp.eq.s32.totalorder %s28, 0
    %p395 = por %p393, %p394
    %p396 = scmp.le.s32.totalorder 1, %s22
    %p397 = scmp.lt.s32.totalorder %s22, 3
    %p398 = pnand %p396, %p397
    %p399 = pneg %p398
    // Predicated region
    $region9: #{tpu_custom_call.1} parent=5 // pred_check
      _
    $region10: #{tpu_custom_call.1} parent=5 // pred_check_branch
      %401 = sbr.rel (%p398) target = $region12
    $region11: #{tpu_custom_call.1} parent=5 // pred_region
      %s402 = ssub.s32 %s22, 1
      // Predicated region
      $region13: #{tpu_custom_call.1} parent=11 // pred_check
        %p403 = pneg %p95
      $region14: #{tpu_custom_call.1} parent=11 // pred_check_branch
        %405 = sbr.rel (%p403) target = $region16
      $region15: #{tpu_custom_call.1} parent=11 // pred_region
        _
      $region16: #{tpu_custom_call.1} parent=11 // pred_fallthru
        _
      // Predicated region
      $region17: #{tpu_custom_call.1} parent=11 // pred_check
        %p406 = pneg %p116
      $region18: #{tpu_custom_call.1} parent=11 // pred_check_branch
        %408 = sbr.rel (%p406) target = $region20
      $region19: #{tpu_custom_call.1} parent=11 // pred_region
        _
      $region20: #{tpu_custom_call.1} parent=11 // pred_fallthru
        _
      // Predicated region
      $region21: #{tpu_custom_call.1} parent=11 // pred_check
        %p409 = pneg %p137
      $region22: #{tpu_custom_call.1} parent=11 // pred_check_branch
        %411 = sbr.rel (%p409) target = $region24
      $region23: #{tpu_custom_call.1} parent=11 // pred_region
        _
      $region24: #{tpu_custom_call.1} parent=11 // pred_fallthru
        _
      // Predicated region
      $region25: #{tpu_custom_call.1} parent=11 // pred_check
        %p412 = pneg %p158
      $region26: #{tpu_custom_call.1} parent=11 // pred_check_branch
        %414 = sbr.rel (%p412) target = $region28
      $region27: #{tpu_custom_call.1} parent=11 // pred_region
        _
      $region28: #{tpu_custom_call.1} parent=11 // pred_fallthru
        _
      // Predicated region
      $region29: #{tpu_custom_call.1} parent=11 // pred_check
        %p415 = pneg %p179
      $region30: #{tpu_custom_call.1} parent=11 // pred_check_branch
        %417 = sbr.rel (%p415) target = $region32
      $region31: #{tpu_custom_call.1} parent=11 // pred_region
        _
      $region32: #{tpu_custom_call.1} parent=11 // pred_fallthru
        _
      // Predicated region
      $region33: #{tpu_custom_call.1} parent=11 // pred_check
        %p418 = pneg %p200
      $region34: #{tpu_custom_call.1} parent=11 // pred_check_branch
        %420 = sbr.rel (%p418) target = $region36
      $region35: #{tpu_custom_call.1} parent=11 // pred_region
        _
      $region36: #{tpu_custom_call.1} parent=11 // pred_fallthru
        _
      // Predicated region
      $region37: #{tpu_custom_call.1} parent=11 // pred_check
        %p421 = pneg %p221
      $region38: #{tpu_custom_call.1} parent=11 // pred_check_branch
        %423 = sbr.rel (%p421) target = $region40
      $region39: #{tpu_custom_call.1} parent=11 // pred_region
        _
      $region40: #{tpu_custom_call.1} parent=11 // pred_fallthru
        _
      // Predicated region
      $region41: #{tpu_custom_call.1} parent=11 // pred_check
        %p424 = pneg %p242
      $region42: #{tpu_custom_call.1} parent=11 // pred_check_branch
        %426 = sbr.rel (%p424) target = $region44
      $region43: #{tpu_custom_call.1} parent=11 // pred_region
        _
      $region44: #{tpu_custom_call.1} parent=11 // pred_fallthru
        _
      // Predicated region
      $region45: #{tpu_custom_call.1} parent=11 // pred_check
        %p427 = pneg %p263
      $region46: #{tpu_custom_call.1} parent=11 // pred_check_branch
        %429 = sbr.rel (%p427) target = $region48
      $region47: #{tpu_custom_call.1} parent=11 // pred_region
        _
      $region48: #{tpu_custom_call.1} parent=11 // pred_fallthru
        _
      // Predicated region
      $region49: #{tpu_custom_call.1} parent=11 // pred_check
        %p430 = pneg %p284
      $region50: #{tpu_custom_call.1} parent=11 // pred_check_branch
        %432 = sbr.rel (%p430) target = $region52
      $region51: #{tpu_custom_call.1} parent=11 // pred_region
        _
      $region52: #{tpu_custom_call.1} parent=11 // pred_fallthru
        _
    $region12: #{tpu_custom_call.1} parent=5 // pred_fallthru
      _
    %p433 = scmp.lt.s32.totalorder %s22, 2
    // Predicated region
    $region53: #{tpu_custom_call.1} parent=5 // pred_check
      %p434 = pneg %p433
    $region54: #{tpu_custom_call.1} parent=5 // pred_check_branch
      %436 = sbr.rel (%p434) target = $region56
    $region55: #{tpu_custom_call.1} parent=5 // pred_region
      // Predicated region
      $region57: #{tpu_custom_call.1} parent=55 // pred_check
        %p437 = pneg %p42
      $region58: #{tpu_custom_call.1} parent=55 // pred_check_branch
        %439 = sbr.rel (%p437) target = $region60
      $region59: #{tpu_custom_call.1} parent=55 // pred_region
        %s440 = smul.u32 2, %s22
        %p441 = scmp.lt.s32.totalorder %s440, 3
        %s442 = scalar_select %p441, %s440, 3
        %s443 = smul.addr %s442, 8
        %s444 = scalar_lea.vmem %s0, %s443
        %s445 = smul.u32 2, %s22
      $region60: #{tpu_custom_call.1} parent=55 // pred_fallthru
        _
      // Predicated region
      $region61: #{tpu_custom_call.1} parent=55 // pred_check
        %p446 = pneg %p68
      $region62: #{tpu_custom_call.1} parent=55 // pred_check_branch
        %448 = sbr.rel (%p446) target = $region64
      $region63: #{tpu_custom_call.1} parent=55 // pred_region
        %s449 = smul.u32 2, %s22
        %p450 = scmp.lt.s32.totalorder %s449, 3
        %s451 = scalar_select %p450, %s449, 3
        %s452 = smul.addr %s451, 8
        %s453 = scalar_lea.vmem %s1, %s452
        %s454 = smul.u32 2, %s22
      $region64: #{tpu_custom_call.1} parent=55 // pred_fallthru
        _
    $region56: #{tpu_custom_call.1} parent=5 // pred_fallthru
      _
    %p455 = scmp.le.s32.totalorder 1, %s22
    %p456 = scmp.lt.s32.totalorder %s22, 3
    %p457 = pnand %p455, %p456
    %p458 = pneg %p457
    // Predicated region
    $region65: #{tpu_custom_call.1} parent=5 // pred_check
      _
    $region66: #{tpu_custom_call.1} parent=5 // pred_check_branch
      %460 = sbr.rel (%p457) target = $region68
    $region67: #{tpu_custom_call.1} parent=5 // pred_region
      %s461 = ssub.s32 %s22, 1
      %s462 = smul.u32 2, %s27
      %p463 = scmp.lt.s32.totalorder %s462, 3
      %s464 = scalar_select %p463, %s462, 3
      %s465 = smul.addr %s464, 8
      %s466 = scalar_lea.vmem %s0, %s465
      %p467 = pneg %p48
      %p468 = pneg %p45
      %s469 = smul.u32 2, %s27
      %p470 = scmp.lt.s32.totalorder %s469, 3
      %s471 = scalar_select %p470, %s469, 3
      %s472 = smul.addr %s471, 8
      %s473 = scalar_lea.vmem %s1, %s472
      %p474 = pneg %p74
      %p475 = pneg %p71
      %p476 = pneg %p95
      %p477 = pneg %p92
      %p478 = pneg %p116
      %p479 = pneg %p113
      %p480 = pneg %p137
      %p481 = pneg %p134
      %p482 = pneg %p158
      %p483 = pneg %p155
      %p484 = pneg %p179
      %p485 = pneg %p176
      %p486 = pneg %p200
      %p487 = pneg %p197
      %p488 = pneg %p221
      %p489 = pneg %p218
      %p490 = pneg %p242
      %p491 = pneg %p239
      %p492 = pneg %p263
      %p493 = pneg %p260
      %p494 = pneg %p284
      %p495 = pneg %p281
      %p496 = pneg %p310
      %p497 = pneg %p307
      %s498 = smul.u32 2, %s27
      %p499 = scmp.lt.s32.totalorder %s498, 3
      %s500 = scalar_select %p499, %s498, 3
      %s501 = smul.addr %s500, 8
      %s502 = scalar_lea.vmem %s12, %s501
      %p503 = pneg %p336
      %p504 = pneg %p333
      %s505 = smul.u32 2, %s27
      %p506 = scmp.lt.s32.totalorder %s505, 3
      %s507 = scalar_select %p506, %s505, 3
      %s508 = smul.addr %s507, 8
      %s509 = scalar_lea.vmem %s13, %s508
      %p510 = pneg %p362
      %p511 = pneg %p359
      %s512 = smul.u32 2, %s27
      %p513 = scmp.lt.s32.totalorder %s512, 3
      %s514 = scalar_select %p513, %s512, 3
      %s515 = smul.addr %s514, 8
      %s516 = scalar_lea.vmem %s14, %s515
      %p517 = pneg %p388
      %p518 = pneg %p385
      %s519 = smul.u32 2, %s27
      %p520 = scmp.lt.s32.totalorder %s519, 3
      %s521 = scalar_select %p520, %s519, 3
      %s522 = smul.addr %s521, 8
      %s523 = scalar_lea.vmem %s15, %s522
      %s524 = smul.u32 2, %s27
      %p525 = scmp.lt.s32.totalorder %s524, 3
      %s526 = scalar_select %p525, %s524, 3
      %s527 = smul.addr %s526, 8
      %s528 = scalar_lea.vmem %s0, %s527
      %s529 = smul.u32 2, %s27
      %s530 = smul.u32 2, %s27
      %p531 = scmp.lt.s32.totalorder %s530, 3
      %s532 = scalar_select %p531, %s530, 3
      %s533 = smul.addr %s532, 8
      %s534 = scalar_lea.vmem %s1, %s533
      %s535 = smul.u32 2, %s27
      %s536 = smul.u32 2, %s27
      %p537 = scmp.lt.s32.totalorder %s536, 3
      %s538 = scalar_select %p537, %s536, 3
      %s539 = smul.addr %s538, 8
      %s540 = scalar_lea.vmem %s12, %s539
      %s541 = smul.u32 2, %s27
      %s542 = smul.u32 2, %s27
      %p543 = scmp.lt.s32.totalorder %s542, 3
      %s544 = scalar_select %p543, %s542, 3
      %s545 = smul.addr %s544, 8
      %s546 = scalar_lea.vmem %s13, %s545
      %s547 = smul.u32 2, %s27
      %s548 = smul.u32 2, %s27
      %p549 = scmp.lt.s32.totalorder %s548, 3
      %s550 = scalar_select %p549, %s548, 3
      %s551 = smul.addr %s550, 8
      %s552 = scalar_lea.vmem %s14, %s551
      %s553 = smul.u32 2, %s27
      %s554 = smul.u32 2, %s27
      %p555 = scmp.lt.s32.totalorder %s554, 3
      %s556 = scalar_select %p555, %s554, 3
      %s557 = smul.addr %s556, 8
      %s558 = scalar_lea.vmem %s15, %s557
      %s559 = smul.u32 2, %s27
      %v561 = vld [vmem:[%s528] sm:$0xff]
      %v562 = vld [vmem:[%s528 + $0x8] sm:$0xff]
      %v563 = vpack.c.bf16 %v562, %v561
      %v564 = vld [vmem:[%s2] sm:$0xf]
      %v565 = vld [vmem:[%s2 + $0x4] sm:$0xf]
      %v566 = vld [vmem:[%s3] sm:$0x1]
      %v568 = vlaneseq
      %v569 = vshrl.u32 %v568, 7
      %v570 = vsub.s32 0, %v569
      %v571 = vrot.slane %v566, %v570
      %v575 = vunpack.c.l.b16 %v564
      %v576 = vunpack.c.l.b16 %v565
      %v577 = vpack.c.b16 %v576, %v575
      %vm579 = vcmask 130048
      %v581 = vsel %vm579, %v563, 0
      %583 = vmatprep.subr.bf16.mxu0 0
      %584 = vmatpush1.bf16.msra.mxu0 %v577
      %585 = vmatprep.subr.bf16.mxu0 0
      %586 = vmatpush1.bf16.msra.mxu0 0
      %587 = vmatprep.subr.bf16.mxu0 0
      %588 = vmatpush1.bf16.msra.mxu0 0
      %589 = vmatprep.subr.bf16.mxu0 0
      %590 = vmatpush1.bf16.msra.mxu0 0
      %591 = vmatprep.subr.bf16.mxu0 0
      %592 = vmatpush1.bf16.msra.mxu0 0
      %593 = vmatprep.subr.bf16.mxu0 0
      %594 = vmatpush1.bf16.msra.mxu0 0
      %595 = vmatprep.subr.bf16.mxu0 0
      %596 = vmatpush1.bf16.msra.mxu0 0
      %597 = vmatprep.subr.bf16.mxu0 0
      %598 = vmatpush1.bf16.msra.mxu0 0
      %599 = vmatprep.subr.bf16.mxu0 0
      %600 = vmatpush1.bf16.msra.mxu0 0
      %601 = vmatprep.subr.bf16.mxu0 0
      %602 = vmatpush1.bf16.msra.mxu0 0
      %603 = vmatprep.subr.bf16.mxu0 0
      %604 = vmatpush1.bf16.msra.mxu0 0
      %605 = vmatprep.subr.bf16.mxu0 0
      %606 = vmatpush1.bf16.msra.mxu0 0
      %607 = vmatprep.subr.bf16.mxu0 0
      %608 = vmatpush1.bf16.msra.mxu0 0
      %609 = vmatprep.subr.bf16.mxu0 0
      %610 = vmatpush1.bf16.msra.mxu0 0
      %611 = vmatprep.subr.bf16.mxu0 0
      %612 = vmatpush1.bf16.msra.mxu0 0
      %613 = vmatprep.subr.bf16.mxu0 0
      %614 = vmatpush1.bf16.msra.mxu0 0
      %615 = vmatprep.mubr.bf16.mxu0 0
      %616 = vmatmul.mubr.bf16.gmra.mrb[0].mxu0 %v581
      %v617 = vpop.f32.mrb[0].mxu0
      %v618 = vadd.f32 %v571, %v617
      %v619 = vpop.f32.mrb[0].mxu0
      %v620 = vpop.f32.mrb[0].mxu0
      %v621 = vadd.f32 %v571, %v620
      %v622 = vpop.f32.mrb[0].mxu0
      %623 = vdwg.mxu0
      %v624 = vtanh.pop %v618
      %v625 = vtanh.pop %v621
      %v626 = vpack.c.bf16 %v625, %v624
      %v627 = vld [vmem:[%s4] sm:$0xf]
      %v628 = vld [vmem:[%s4 + $0x4] sm:$0xf]
      %v629 = vld [vmem:[%s4 + $0x8] sm:$0xf]
      %v630 = vld [vmem:[%s4 + $0xc] sm:$0xf]
      %v631 = vld [vmem:[%s5] sm:$0x1]
      %v633 = vlaneseq
      %v634 = vshrl.u32 %v633, 7
      %v635 = vsub.s32 0, %v634
      %v636 = vrot.slane %v631, %v635
      %v642 = vunpack.c.l.b16 %v627
      %v643 = vunpack.c.l.b16 %v628
      %v644 = vunpack.c.l.b16 %v629
      %v645 = vunpack.c.l.b16 %v630
      %v646 = vpack.c.b16 %v643, %v642
      %v647 = vpack.c.b16 %v645, %v644
      %vm650 = vcmask 261120
      %v652 = vsel %vm650, %v626, 0
      %654 = vmatprep.subr.bf16.mxu0 0
      %655 = vmatpush1.bf16.msra.mxu0 %v646
      %656 = vmatprep.subr.bf16.mxu0 0
      %657 = vmatpush1.bf16.msra.mxu0 %v647
      %658 = vmatprep.subr.bf16.mxu0 0
      %659 = vmatpush1.bf16.msra.mxu0 0
      %660 = vmatprep.subr.bf16.mxu0 0
      %661 = vmatpush1.bf16.msra.mxu0 0
      %662 = vmatprep.subr.bf16.mxu0 0
      %663 = vmatpush1.bf16.msra.mxu0 0
      %664 = vmatprep.subr.bf16.mxu0 0
      %665 = vmatpush1.bf16.msra.mxu0 0
      %666 = vmatprep.subr.bf16.mxu0 0
      %667 = vmatpush1.bf16.msra.mxu0 0
      %668 = vmatprep.subr.bf16.mxu0 0
      %669 = vmatpush1.bf16.msra.mxu0 0
      %670 = vmatprep.subr.bf16.mxu0 0
      %671 = vmatpush1.bf16.msra.mxu0 0
      %672 = vmatprep.subr.bf16.mxu0 0
      %673 = vmatpush1.bf16.msra.mxu0 0
      %674 = vmatprep.subr.bf16.mxu0 0
      %675 = vmatpush1.bf16.msra.mxu0 0
      %676 = vmatprep.subr.bf16.mxu0 0
      %677 = vmatpush1.bf16.msra.mxu0 0
      %678 = vmatprep.subr.bf16.mxu0 0
      %679 = vmatpush1.bf16.msra.mxu0 0
      %680 = vmatprep.subr.bf16.mxu0 0
      %681 = vmatpush1.bf16.msra.mxu0 0
      %682 = vmatprep.subr.bf16.mxu0 0
      %683 = vmatpush1.bf16.msra.mxu0 0
      %684 = vmatprep.subr.bf16.mxu0 0
      %685 = vmatpush1.bf16.msra.mxu0 0
      %686 = vmatprep.mubr.bf16.mxu0 0
      %687 = vmatmul.mubr.bf16.gmra.mrb[0].mxu0 %v652
      %v688 = vpop.f32.mrb[0].mxu0
      %v689 = vadd.f32 %v636, %v688
      %v690 = vpop.f32.mrb[0].mxu0
      %v691 = vpop.f32.mrb[0].mxu0
      %v692 = vadd.f32 %v636, %v691
      %v693 = vpop.f32.mrb[0].mxu0
      %694 = vdwg.mxu0
      %v695 = vld [vmem:[%s6] sm:$0xf]
      %v696 = vld [vmem:[%s6 + $0x4] sm:$0xf]
      %v697 = vld [vmem:[%s6 + $0x8] sm:$0xf]
      %v698 = vld [vmem:[%s6 + $0xc] sm:$0xf]
      %v699 = vld [vmem:[%s7] sm:$0x1]
      %v701 = vlaneseq
      %v702 = vshrl.u32 %v701, 7
      %v703 = vsub.s32 0, %v702
      %v704 = vrot.slane %v699, %v703
      %v710 = vunpack.c.l.b16 %v695
      %v711 = vunpack.c.l.b16 %v696
      %v712 = vunpack.c.l.b16 %v697
      %v713 = vunpack.c.l.b16 %v698
      %v714 = vpack.c.b16 %v711, %v710
      %v715 = vpack.c.b16 %v713, %v712
      %718 = vmatprep.subr.bf16.mxu0 0
      %719 = vmatpush1.bf16.msra.mxu0 %v714
      %720 = vmatprep.subr.bf16.mxu0 0
      %721 = vmatpush1.bf16.msra.mxu0 %v715
      %722 = vmatprep.subr.bf16.mxu0 0
      %723 = vmatpush1.bf16.msra.mxu0 0
      %724 = vmatprep.subr.bf16.mxu0 0
      %725 = vmatpush1.bf16.msra.mxu0 0
      %726 = vmatprep.subr.bf16.mxu0 0
      %727 = vmatpush1.bf16.msra.mxu0 0
      %728 = vmatprep.subr.bf16.mxu0 0
      %729 = vmatpush1.bf16.msra.mxu0 0
      %730 = vmatprep.subr.bf16.mxu0 0
      %731 = vmatpush1.bf16.msra.mxu0 0
      %732 = vmatprep.subr.bf16.mxu0 0
      %733 = vmatpush1.bf16.msra.mxu0 0
      %734 = vmatprep.subr.bf16.mxu0 0
      %735 = vmatpush1.bf16.msra.mxu0 0
      %736 = vmatprep.subr.bf16.mxu0 0
      %737 = vmatpush1.bf16.msra.mxu0 0
      %738 = vmatprep.subr.bf16.mxu0 0
      %739 = vmatpush1.bf16.msra.mxu0 0
      %740 = vmatprep.subr.bf16.mxu0 0
      %741 = vmatpush1.bf16.msra.mxu0 0
      %742 = vmatprep.subr.bf16.mxu0 0
      %743 = vmatpush1.bf16.msra.mxu0 0
      %744 = vmatprep.subr.bf16.mxu0 0
      %745 = vmatpush1.bf16.msra.mxu0 0
      %746 = vmatprep.subr.bf16.mxu0 0
      %747 = vmatpush1.bf16.msra.mxu0 0
      %748 = vmatprep.subr.bf16.mxu0 0
      %749 = vmatpush1.bf16.msra.mxu0 0
      %750 = vmatprep.mubr.bf16.mxu0 0
      %751 = vmatmul.mubr.bf16.gmra.mrb[0].mxu0 %v652
      %v752 = vpop.f32.mrb[0].mxu0
      %v753 = vadd.f32 %v704, %v752
      %v754 = vpop.f32.mrb[0].mxu0
      %v755 = vpop.f32.mrb[0].mxu0
      %v756 = vadd.f32 %v704, %v755
      %v757 = vpop.f32.mrb[0].mxu0
      %758 = vdwg.mxu0
      %v759 = vmul.f32 %v753, 0.5
      %v760 = vmul.f32 %v756, 0.5
      %v761 = vmul.f32 %v759, 1.442695
      %v762 = vpow.pop %v761
      %v763 = vmul.f32 %v760, 1.442695
      %v764 = vpow.pop %v763
      %v765 = vld [vmem:[%s534] sm:$0xff]
      %v766 = vld [vmem:[%s534 + $0x8] sm:$0xff]
      %v767 = vmul.f32 %v765, %v762
      %v768 = vmul.f32 %v766, %v764
      %v769 = vadd.f32 %v689, %v767
      %v770 = vadd.f32 %v692, %v768
      %v771 = vpack.c.bf16 %v770, %v769
      %v772 = vld [vmem:[%s8] sm:$0xf]
      %v773 = vld [vmem:[%s9] sm:$0x1]
      %v775 = vlaneseq
      %v776 = vshrl.u32 %v775, 7
      %v777 = vsub.s32 0, %v776
      %v778 = vrot.slane %v773, %v777
      %vm780 = vcmask 64512
      %v782 = vsel %vm780, %v771, 0
      %vm784 = vcmask 1043456
      %v786 = vsel %vm784, %v772, 0
      %788 = vmatprep.subr.bf16.mxu0 0
      %789 = vmatpush1.bf16.msra.mxu0 %v786
      %790 = vmatprep.subr.bf16.mxu0 0
      %791 = vmatpush1.bf16.msra.mxu0 0
      %792 = vmatprep.subr.bf16.mxu0 0
      %793 = vmatpush1.bf16.msra.mxu0 0
      %794 = vmatprep.subr.bf16.mxu0 0
      %795 = vmatpush1.bf16.msra.mxu0 0
      %796 = vmatprep.subr.bf16.mxu0 0
      %797 = vmatpush1.bf16.msra.mxu0 0
      %798 = vmatprep.subr.bf16.mxu0 0
      %799 = vmatpush1.bf16.msra.mxu0 0
      %800 = vmatprep.subr.bf16.mxu0 0
      %801 = vmatpush1.bf16.msra.mxu0 0
      %802 = vmatprep.subr.bf16.mxu0 0
      %803 = vmatpush1.bf16.msra.mxu0 0
      %804 = vmatprep.subr.bf16.mxu0 0
      %805 = vmatpush1.bf16.msra.mxu0 0
      %806 = vmatprep.subr.bf16.mxu0 0
      %807 = vmatpush1.bf16.msra.mxu0 0
      %808 = vmatprep.subr.bf16.mxu0 0
      %809 = vmatpush1.bf16.msra.mxu0 0
      %810 = vmatprep.subr.bf16.mxu0 0
      %811 = vmatpush1.bf16.msra.mxu0 0
      %812 = vmatprep.subr.bf16.mxu0 0
      %813 = vmatpush1.bf16.msra.mxu0 0
      %814 = vmatprep.subr.bf16.mxu0 0
      %815 = vmatpush1.bf16.msra.mxu0 0
      %816 = vmatprep.subr.bf16.mxu0 0
      %817 = vmatpush1.bf16.msra.mxu0 0
      %818 = vmatprep.subr.bf16.mxu0 0
      %819 = vmatpush1.bf16.msra.mxu0 0
      %820 = vmatprep.mubr.bf16.mxu0 0
      %821 = vmatmul.mubr.bf16.gmra.mrb[0].mxu0 %v782
      %v822 = vpop.f32.mrb[0].mxu0
      %v823 = vadd.f32 %v778, %v822
      %v824 = vpop.f32.mrb[0].mxu0
      %v825 = vpop.f32.mrb[0].mxu0
      %v826 = vadd.f32 %v778, %v825
      %v827 = vpop.f32.mrb[0].mxu0
      %828 = vdwg.mxu0
      %v829 = vtanh.pop %v823
      %v830 = vtanh.pop %v826
      %v831 = vpack.c.bf16 %v830, %v829
      %v832 = vld [vmem:[%s10] sm:$0xf]
      %v833 = vld [vmem:[%s10 + $0x4] sm:$0xf]
      %v834 = vld [vmem:[%s10 + $0x8] sm:$0xf]
      %v835 = vld [vmem:[%s10 + $0xc] sm:$0xf]
      %v836 = vld [vmem:[%s11] sm:$0x1]
      %v838 = vlaneseq
      %v839 = vshrl.u32 %v838, 7
      %v840 = vsub.s32 0, %v839
      %v841 = vrot.slane %v836, %v840
      %v847 = vunpack.c.l.b16 %v832
      %v848 = vunpack.c.l.b16 %v833
      %v849 = vunpack.c.l.b16 %v834
      %v850 = vunpack.c.l.b16 %v835
      %v851 = vpack.c.b16 %v848, %v847
      %v852 = vpack.c.b16 %v850, %v849
      %v856 = vsel %vm650, %v831, 0
      %858 = vmatprep.subr.bf16.mxu0 0
      %859 = vmatpush1.bf16.msra.mxu0 %v851
      %860 = vmatprep.subr.bf16.mxu0 0
      %861 = vmatpush1.bf16.msra.mxu0 %v852
      %862 = vmatprep.subr.bf16.mxu0 0
      %863 = vmatpush1.bf16.msra.mxu0 0
      %864 = vmatprep.subr.bf16.mxu0 0
      %865 = vmatpush1.bf16.msra.mxu0 0
      %866 = vmatprep.subr.bf16.mxu0 0
      %867 = vmatpush1.bf16.msra.mxu0 0
      %868 = vmatprep.subr.bf16.mxu0 0
      %869 = vmatpush1.bf16.msra.mxu0 0
      %870 = vmatprep.subr.bf16.mxu0 0
      %871 = vmatpush1.bf16.msra.mxu0 0
      %872 = vmatprep.subr.bf16.mxu0 0
      %873 = vmatpush1.bf16.msra.mxu0 0
      %874 = vmatprep.subr.bf16.mxu0 0
      %875 = vmatpush1.bf16.msra.mxu0 0
      %876 = vmatprep.subr.bf16.mxu0 0
      %877 = vmatpush1.bf16.msra.mxu0 0
      %878 = vmatprep.subr.bf16.mxu0 0
      %879 = vmatpush1.bf16.msra.mxu0 0
      %880 = vmatprep.subr.bf16.mxu0 0
      %881 = vmatpush1.bf16.msra.mxu0 0
      %882 = vmatprep.subr.bf16.mxu0 0
      %883 = vmatpush1.bf16.msra.mxu0 0
      %884 = vmatprep.subr.bf16.mxu0 0
      %885 = vmatpush1.bf16.msra.mxu0 0
      %886 = vmatprep.subr.bf16.mxu0 0
      %887 = vmatpush1.bf16.msra.mxu0 0
      %888 = vmatprep.subr.bf16.mxu0 0
      %889 = vmatpush1.bf16.msra.mxu0 0
      %890 = vmatprep.mubr.bf16.mxu0 0
      %891 = vmatmul.mubr.bf16.gmra.mrb[0].mxu0 %v856
      %v892 = vpop.f32.mrb[0].mxu0
      %v893 = vadd.f32 %v841, %v892
      %v894 = vpop.f32.mrb[0].mxu0
      %v895 = vpop.f32.mrb[0].mxu0
      %v896 = vadd.f32 %v841, %v895
      %v897 = vpop.f32.mrb[0].mxu0
      %898 = vdwg.mxu0
      %899 = vst.msk [vmem:[%s540] sm:$0xff] %vm579, %v893
      %900 = vst.msk [vmem:[%s540 + $0x8] sm:$0xff] %vm579, %v896
      %901 = vst.msk [vmem:[%s546] sm:$0xff] %vm780, %v689
      %902 = vst.msk [vmem:[%s546 + $0x8] sm:$0xff] %vm780, %v692
      %903 = vst.msk [vmem:[%s552] sm:$0xff] %vm780, %v753
      %904 = vst.msk [vmem:[%s552 + $0x8] sm:$0xff] %vm780, %v756
      %905 = vst.msk [vmem:[%s558] sm:$0xff] %vm780, %v769
      %906 = vst.msk [vmem:[%s558 + $0x8] sm:$0xff] %vm780, %v770
      %s907 = smul.u32 2, %s27
      %p908 = scmp.lt.s32.totalorder %s907, 3
      %s909 = scalar_select %p908, %s907, 3
      %s910 = smul.addr %s909, 8
      %s911 = scalar_lea.vmem %s12, %s910
      %s912 = smul.u32 2, %s27
      %p913 = scmp.lt.s32.totalorder %s912, 3
      %s914 = scalar_select %p913, %s912, 3
      %s915 = smul.addr %s914, 8
      %s916 = scalar_lea.vmem %s13, %s915
      %s917 = smul.u32 2, %s27
      %p918 = scmp.lt.s32.totalorder %s917, 3
      %s919 = scalar_select %p918, %s917, 3
      %s920 = smul.addr %s919, 8
      %s921 = scalar_lea.vmem %s14, %s920
      %s922 = smul.u32 2, %s27
      %p923 = scmp.lt.s32.totalorder %s922, 3
      %s924 = scalar_select %p923, %s922, 3
      %s925 = smul.addr %s924, 8
      %s926 = scalar_lea.vmem %s15, %s925
      // Predicated region
      $region69: #{tpu_custom_call.1} parent=67 // pred_check
        %p927 = pneg %p307
      $region70: #{tpu_custom_call.1} parent=67 // pred_check_branch
        %929 = sbr.rel (%p927) target = $region72
      $region71: #{tpu_custom_call.1} parent=67 // pred_region
        %s930 = smul.u32 2, %s27
      $region72: #{tpu_custom_call.1} parent=67 // pred_fallthru
        _
      // Predicated region
      $region73: #{tpu_custom_call.1} parent=67 // pred_check
        %p931 = pneg %p333
      $region74: #{tpu_custom_call.1} parent=67 // pred_check_branch
        %933 = sbr.rel (%p931) target = $region76
      $region75: #{tpu_custom_call.1} parent=67 // pred_region
        %s934 = smul.u32 2, %s27
      $region76: #{tpu_custom_call.1} parent=67 // pred_fallthru
        _
      // Predicated region
      $region77: #{tpu_custom_call.1} parent=67 // pred_check
        %p935 = pneg %p359
      $region78: #{tpu_custom_call.1} parent=67 // pred_check_branch
        %937 = sbr.rel (%p935) target = $region80
      $region79: #{tpu_custom_call.1} parent=67 // pred_region
        %s938 = smul.u32 2, %s27
      $region80: #{tpu_custom_call.1} parent=67 // pred_fallthru
        _
      // Predicated region
      $region81: #{tpu_custom_call.1} parent=67 // pred_check
        %p939 = pneg %p385
      $region82: #{tpu_custom_call.1} parent=67 // pred_check_branch
        %941 = sbr.rel (%p939) target = $region84
      $region83: #{tpu_custom_call.1} parent=67 // pred_region
        %s942 = smul.u32 2, %s27
      $region84: #{tpu_custom_call.1} parent=67 // pred_fallthru
        _
    $region68: #{tpu_custom_call.1} parent=5 // pred_fallthru
      _
    %p943 = scmp.le.s32.totalorder 2, %s22
    // Predicated region
    $region85: #{tpu_custom_call.1} parent=5 // pred_check
      %p944 = pneg %p943
    $region86: #{tpu_custom_call.1} parent=5 // pred_check_branch
      %946 = sbr.rel (%p944) target = $region88
    $region87: #{tpu_custom_call.1} parent=5 // pred_region
      %s947 = ssub.s32 %s22, 2
      // Predicated region
      $region89: #{tpu_custom_call.1} parent=87 // pred_check
        %p948 = pneg %p313
      $region90: #{tpu_custom_call.1} parent=87 // pred_check_branch
        %950 = sbr.rel (%p948) target = $region92
      $region91: #{tpu_custom_call.1} parent=87 // pred_region
        %s951 = smul.u32 2, %s28
        %p952 = scmp.lt.s32.totalorder %s951, 3
        %s953 = scalar_select %p952, %s951, 3
        %s954 = smul.addr %s953, 8
        %s955 = scalar_lea.vmem %s12, %s954
      $region92: #{tpu_custom_call.1} parent=87 // pred_fallthru
        _
      // Predicated region
      $region93: #{tpu_custom_call.1} parent=87 // pred_check
        %p956 = pneg %p339
      $region94: #{tpu_custom_call.1} parent=87 // pred_check_branch
        %958 = sbr.rel (%p956) target = $region96
      $region95: #{tpu_custom_call.1} parent=87 // pred_region
        %s959 = smul.u32 2, %s28
        %p960 = scmp.lt.s32.totalorder %s959, 3
        %s961 = scalar_select %p960, %s959, 3
        %s962 = smul.addr %s961, 8
        %s963 = scalar_lea.vmem %s13, %s962
      $region96: #{tpu_custom_call.1} parent=87 // pred_fallthru
        _
      // Predicated region
      $region97: #{tpu_custom_call.1} parent=87 // pred_check
        %p964 = pneg %p365
      $region98: #{tpu_custom_call.1} parent=87 // pred_check_branch
        %966 = sbr.rel (%p964) target = $region100
      $region99: #{tpu_custom_call.1} parent=87 // pred_region
        %s967 = smul.u32 2, %s28
        %p968 = scmp.lt.s32.totalorder %s967, 3
        %s969 = scalar_select %p968, %s967, 3
        %s970 = smul.addr %s969, 8
        %s971 = scalar_lea.vmem %s14, %s970
      $region100: #{tpu_custom_call.1} parent=87 // pred_fallthru
        _
      // Predicated region
      $region101: #{tpu_custom_call.1} parent=87 // pred_check
        %p972 = pneg %p391
      $region102: #{tpu_custom_call.1} parent=87 // pred_check_branch
        %974 = sbr.rel (%p972) target = $region104
      $region103: #{tpu_custom_call.1} parent=87 // pred_region
        %s975 = smul.u32 2, %s28
        %p976 = scmp.lt.s32.totalorder %s975, 3
        %s977 = scalar_select %p976, %s975, 3
        %s978 = smul.addr %s977, 8
        %s979 = scalar_lea.vmem %s15, %s978
      $region104: #{tpu_custom_call.1} parent=87 // pred_fallthru
        _
    $region88: #{tpu_custom_call.1} parent=5 // pred_fallthru
      _
  $region6: #{tpu_custom_call.1} parent=0 // loop_footer
    %s26 = sadd.s32 1, %s22
  $region7: #{tpu_custom_call.1} parent=0 // loop_footer_branch
    %21 = sbr.rel target = $region3
  $region8: #{tpu_custom_call.1} parent=0 // loop_exit
    _

// kernel: tpu_custom_call.1
$region0: #{tpu_custom_call.1}
  #allocation0 [shape = 'u32[]', space=smem, size = 0x4, offset = 0x4, fixed_abs, tag = 'smem constant byte address 0x4 - core index']
  #allocation1 [shape = 'u32[144,128]{1,0:T(1,128)}', space=vmem, size = 0x12000, scoped, tag = 'internal scratch']
  %s0 = inlined_call_operand.vmem [shape: f32[32,16], index: 0, kind: input, shape index: {}]
  %s1 = inlined_call_operand.vmem [shape: f32[32,8], index: 1, kind: input, shape index: {}]
  %s2 = inlined_call_operand.vmem [shape: bf16[16,32], index: 2, kind: input, shape index: {}]
  %s3 = inlined_call_operand.vmem [shape: f32[1,32], index: 3, kind: input, shape index: {}]
  %s4 = inlined_call_operand.vmem [shape: bf16[32,8], index: 4, kind: input, shape index: {}]
  %s5 = inlined_call_operand.vmem [shape: f32[1,8], index: 5, kind: input, shape index: {}]
  %s6 = inlined_call_operand.vmem [shape: bf16[32,8], index: 6, kind: input, shape index: {}]
  %s7 = inlined_call_operand.vmem [shape: f32[1,8], index: 7, kind: input, shape index: {}]
  %s8 = inlined_call_operand.vmem [shape: bf16[8,32], index: 8, kind: input, shape index: {}]
  %s9 = inlined_call_operand.vmem [shape: f32[1,32], index: 9, kind: input, shape index: {}]
  %s10 = inlined_call_operand.vmem [shape: bf16[32,16], index: 10, kind: input, shape index: {}]
  %s11 = inlined_call_operand.vmem [shape: f32[1,16], index: 11, kind: input, shape index: {}]
  %s12 = inlined_call_operand.vmem [shape: f32[32,16], index: 12, kind: output, shape index: {0}]
  %s13 = inlined_call_operand.vmem [shape: f32[32,8], index: 13, kind: output, shape index: {1}]
  %s14 = inlined_call_operand.vmem [shape: f32[32,8], index: 14, kind: output, shape index: {2}]
  %s15 = inlined_call_operand.vmem [shape: f32[32,8], index: 15, kind: output, shape index: {3}]
  %16 = xla_tuple %s12, %s13, %s14, %s15
  %s17 = sld [smem:[#allocation0]]
  $region105: #{tpu_custom_call.1} parent=0
    _
  %s19 = ssub.s32 1, %s17
  %s20 = scalar_select 0, %s19, %s17
  loop: start=0, step=1, limit=4
  $region2: #{tpu_custom_call.1} parent=0 // loop_pre_header
    _
  $region3: #{tpu_custom_call.1} parent=0 // loop_header
    %s22 = sphi 0, %s26
    %p23 = scmp.ge.s32.totalorder %s22, 4
    %s32 = sphi 0, %s34
    %s35 = sphi 0, %s32
    %s36 = sphi 0, %s35
    %s52 = sphi 0, %s36
    %s58 = sphi 0, %s60
    %s61 = sphi 0, %s58
    %s62 = sphi 0, %s61
    %s78 = sphi 0, %s62
    %s82 = sphi 0, %s82
    %s84 = sphi 0, %s82
    %s85 = sphi 0, %s84
    %s99 = sphi 0, %s85
    %s103 = sphi 0, %s103
    %s105 = sphi 0, %s103
    %s106 = sphi 0, %s105
    %s120 = sphi 0, %s106
    %s124 = sphi 0, %s124
    %s126 = sphi 0, %s124
    %s127 = sphi 0, %s126
    %s141 = sphi 0, %s127
    %s145 = sphi 0, %s145
    %s147 = sphi 0, %s145
    %s148 = sphi 0, %s147
    %s162 = sphi 0, %s148
    %s166 = sphi 0, %s166
    %s168 = sphi 0, %s166
    %s169 = sphi 0, %s168
    %s183 = sphi 0, %s169
    %s187 = sphi 0, %s187
    %s189 = sphi 0, %s187
    %s190 = sphi 0, %s189
    %s204 = sphi 0, %s190
    %s208 = sphi 0, %s208
    %s210 = sphi 0, %s208
    %s211 = sphi 0, %s210
    %s225 = sphi 0, %s211
    %s229 = sphi 0, %s229
    %s231 = sphi 0, %s229
    %s232 = sphi 0, %s231
    %s246 = sphi 0, %s232
    %s250 = sphi 0, %s250
    %s252 = sphi 0, %s250
    %s253 = sphi 0, %s252
    %s267 = sphi 0, %s253
    %s271 = sphi 0, %s271
    %s273 = sphi 0, %s271
    %s274 = sphi 0, %s273
    %s288 = sphi 0, %s274
    %s294 = sphi 0, %s296
    %s297 = sphi 0, %s294
    %s298 = sphi 0, %s297
    %s314 = sphi 0, %s298
    %s320 = sphi 0, %s322
    %s323 = sphi 0, %s320
    %s324 = sphi 0, %s323
    %s340 = sphi 0, %s324
    %s346 = sphi 0, %s348
    %s349 = sphi 0, %s346
    %s350 = sphi 0, %s349
    %s366 = sphi 0, %s350
    %s372 = sphi 0, %s374
    %s375 = sphi 0, %s372
    %s376 = sphi 0, %s375
    %s392 = sphi 0, %s376
  $region4: #{tpu_custom_call.1} parent=0 // loop_header_branch
    %25 = sbr.rel (%p23) target = $region8
  $region5: #{tpu_custom_call.1} parent=0 // loop_body
    %s27 = ssub.s32 %s22, 1
    %s28 = ssub.s32 %s22, 2
    %s29 = sadd.s32 %s22, 1
    %s30 = ssub.s32 %s22, %s29
    %p31 = scmp.eq.s32.totalorder %s30, 0
    %s33 = sadd.s32 %s32, 1
    %s34 = scalar_select %p31, %s32, %s33
    %p37 = pneg %p31
    %p38 = scmp.eq.s32.totalorder %s22, 1
    %p39 = por %p37, %p38
    %p40 = scmp.ne.s32.totalorder %s32, %s35
    %p41 = scmp.eq.s32.totalorder %s22, 0
    %p42 = por %p40, %p41
    %p43 = scmp.ne.s32.totalorder %s32, %s35
    %p44 = scmp.eq.s32.totalorder %s27, 1
    %p45 = por %p43, %p44
    %p46 = scmp.ne.s32.totalorder %s35, %s36
    %p47 = scmp.eq.s32.totalorder %s27, 0
    %p48 = por %p46, %p47
    %p49 = scmp.ne.s32.totalorder %s35, %s36
    %p50 = scmp.eq.s32.totalorder %s28, 1
    %p51 = por %p49, %p50
    %p53 = scmp.ne.s32.totalorder %s36, %s52
    %p54 = scmp.eq.s32.totalorder %s28, 0
    %p55 = por %p53, %p54
    %s56 = ssub.s32 %s22, %s29
    %p57 = scmp.eq.s32.totalorder %s56, 0
    %s59 = sadd.s32 %s58, 1
    %s60 = scalar_select %p57, %s58, %s59
    %p63 = pneg %p57
    %p64 = scmp.eq.s32.totalorder %s22, 1
    %p65 = por %p63, %p64
    %p66 = scmp.ne.s32.totalorder %s58, %s61
    %p67 = scmp.eq.s32.totalorder %s22, 0
    %p68 = por %p66, %p67
    %p69 = scmp.ne.s32.totalorder %s58, %s61
    %p70 = scmp.eq.s32.totalorder %s27, 1
    %p71 = por %p69, %p70
    %p72 = scmp.ne.s32.totalorder %s61, %s62
    %p73 = scmp.eq.s32.totalorder %s27, 0
    %p74 = por %p72, %p73
    %p75 = scmp.ne.s32.totalorder %s61, %s62
    %p76 = scmp.eq.s32.totalorder %s28, 1
    %p77 = por %p75, %p76
    %p79 = scmp.ne.s32.totalorder %s62, %s78
    %p80 = scmp.eq.s32.totalorder %s28, 0
    %p81 = por %p79, %p80
    %s83 = sadd.s32 %s82, 1
    %p86 = scmp.eq.s32.totalorder %s22, 1
    %p87 = scmp.ne.s32.totalorder %s82, %s84
    %p88 = scmp.eq.s32.totalorder %s22, 0
    %p89 = por %p87, %p88
    %p90 = scmp.ne.s32.totalorder %s82, %s84
    %p91 = scmp.eq.s32.totalorder %s27, 1
    %p92 = por %p90, %p91
    %p93 = scmp.ne.s32.totalorder %s84, %s85
    %p94 = scmp.eq.s32.totalorder %s27, 0
    %p95 = por %p93, %p94
    %p96 = scmp.ne.s32.totalorder %s84, %s85
    %p97 = scmp.eq.s32.totalorder %s28, 1
    %p98 = por %p96, %p97
    %p100 = scmp.ne.s32.totalorder %s85, %s99
    %p101 = scmp.eq.s32.totalorder %s28, 0
    %p102 = por %p100, %p101
    %s104 = sadd.s32 %s103, 1
    %p107 = scmp.eq.s32.totalorder %s22, 1
    %p108 = scmp.ne.s32.totalorder %s103, %s105
    %p109 = scmp.eq.s32.totalorder %s22, 0
    %p110 = por %p108, %p109
    %p111 = scmp.ne.s32.totalorder %s103, %s105
    %p112 = scmp.eq.s32.totalorder %s27, 1
    %p113 = por %p111, %p112
    %p114 = scmp.ne.s32.totalorder %s105, %s106
    %p115 = scmp.eq.s32.totalorder %s27, 0
    %p116 = por %p114, %p115
    %p117 = scmp.ne.s32.totalorder %s105, %s106
    %p118 = scmp.eq.s32.totalorder %s28, 1
    %p119 = por %p117, %p118
    %p121 = scmp.ne.s32.totalorder %s106, %s120
    %p122 = scmp.eq.s32.totalorder %s28, 0
    %p123 = por %p121, %p122
    %s125 = sadd.s32 %s124, 1
    %p128 = scmp.eq.s32.totalorder %s22, 1
    %p129 = scmp.ne.s32.totalorder %s124, %s126
    %p130 = scmp.eq.s32.totalorder %s22, 0
    %p131 = por %p129, %p130
    %p132 = scmp.ne.s32.totalorder %s124, %s126
    %p133 = scmp.eq.s32.totalorder %s27, 1
    %p134 = por %p132, %p133
    %p135 = scmp.ne.s32.totalorder %s126, %s127
    %p136 = scmp.eq.s32.totalorder %s27, 0
    %p137 = por %p135, %p136
    %p138 = scmp.ne.s32.totalorder %s126, %s127
    %p139 = scmp.eq.s32.totalorder %s28, 1
    %p140 = por %p138, %p139
    %p142 = scmp.ne.s32.totalorder %s127, %s141
    %p143 = scmp.eq.s32.totalorder %s28, 0
    %p144 = por %p142, %p143
    %s146 = sadd.s32 %s145, 1
    %p149 = scmp.eq.s32.totalorder %s22, 1
    %p150 = scmp.ne.s32.totalorder %s145, %s147
    %p151 = scmp.eq.s32.totalorder %s22, 0
    %p152 = por %p150, %p151
    %p153 = scmp.ne.s32.totalorder %s145, %s147
    %p154 = scmp.eq.s32.totalorder %s27, 1
    %p155 = por %p153, %p154
    %p156 = scmp.ne.s32.totalorder %s147, %s148
    %p157 = scmp.eq.s32.totalorder %s27, 0
    %p158 = por %p156, %p157
    %p159 = scmp.ne.s32.totalorder %s147, %s148
    %p160 = scmp.eq.s32.totalorder %s28, 1
    %p161 = por %p159, %p160
    %p163 = scmp.ne.s32.totalorder %s148, %s162
    %p164 = scmp.eq.s32.totalorder %s28, 0
    %p165 = por %p163, %p164
    %s167 = sadd.s32 %s166, 1
    %p170 = scmp.eq.s32.totalorder %s22, 1
    %p171 = scmp.ne.s32.totalorder %s166, %s168
    %p172 = scmp.eq.s32.totalorder %s22, 0
    %p173 = por %p171, %p172
    %p174 = scmp.ne.s32.totalorder %s166, %s168
    %p175 = scmp.eq.s32.totalorder %s27, 1
    %p176 = por %p174, %p175
    %p177 = scmp.ne.s32.totalorder %s168, %s169
    %p178 = scmp.eq.s32.totalorder %s27, 0
    %p179 = por %p177, %p178
    %p180 = scmp.ne.s32.totalorder %s168, %s169
    %p181 = scmp.eq.s32.totalorder %s28, 1
    %p182 = por %p180, %p181
    %p184 = scmp.ne.s32.totalorder %s169, %s183
    %p185 = scmp.eq.s32.totalorder %s28, 0
    %p186 = por %p184, %p185
    %s188 = sadd.s32 %s187, 1
    %p191 = scmp.eq.s32.totalorder %s22, 1
    %p192 = scmp.ne.s32.totalorder %s187, %s189
    %p193 = scmp.eq.s32.totalorder %s22, 0
    %p194 = por %p192, %p193
    %p195 = scmp.ne.s32.totalorder %s187, %s189
    %p196 = scmp.eq.s32.totalorder %s27, 1
    %p197 = por %p195, %p196
    %p198 = scmp.ne.s32.totalorder %s189, %s190
    %p199 = scmp.eq.s32.totalorder %s27, 0
    %p200 = por %p198, %p199
    %p201 = scmp.ne.s32.totalorder %s189, %s190
    %p202 = scmp.eq.s32.totalorder %s28, 1
    %p203 = por %p201, %p202
    %p205 = scmp.ne.s32.totalorder %s190, %s204
    %p206 = scmp.eq.s32.totalorder %s28, 0
    %p207 = por %p205, %p206
    %s209 = sadd.s32 %s208, 1
    %p212 = scmp.eq.s32.totalorder %s22, 1
    %p213 = scmp.ne.s32.totalorder %s208, %s210
    %p214 = scmp.eq.s32.totalorder %s22, 0
    %p215 = por %p213, %p214
    %p216 = scmp.ne.s32.totalorder %s208, %s210
    %p217 = scmp.eq.s32.totalorder %s27, 1
    %p218 = por %p216, %p217
    %p219 = scmp.ne.s32.totalorder %s210, %s211
    %p220 = scmp.eq.s32.totalorder %s27, 0
    %p221 = por %p219, %p220
    %p222 = scmp.ne.s32.totalorder %s210, %s211
    %p223 = scmp.eq.s32.totalorder %s28, 1
    %p224 = por %p222, %p223
    %p226 = scmp.ne.s32.totalorder %s211, %s225
    %p227 = scmp.eq.s32.totalorder %s28, 0
    %p228 = por %p226, %p227
    %s230 = sadd.s32 %s229, 1
    %p233 = scmp.eq.s32.totalorder %s22, 1
    %p234 = scmp.ne.s32.totalorder %s229, %s231
    %p235 = scmp.eq.s32.totalorder %s22, 0
    %p236 = por %p234, %p235
    %p237 = scmp.ne.s32.totalorder %s229, %s231
    %p238 = scmp.eq.s32.totalorder %s27, 1
    %p239 = por %p237, %p238
    %p240 = scmp.ne.s32.totalorder %s231, %s232
    %p241 = scmp.eq.s32.totalorder %s27, 0
    %p242 = por %p240, %p241
    %p243 = scmp.ne.s32.totalorder %s231, %s232
    %p244 = scmp.eq.s32.totalorder %s28, 1
    %p245 = por %p243, %p244
    %p247 = scmp.ne.s32.totalorder %s232, %s246
    %p248 = scmp.eq.s32.totalorder %s28, 0
    %p249 = por %p247, %p248
    %s251 = sadd.s32 %s250, 1
    %p254 = scmp.eq.s32.totalorder %s22, 1
    %p255 = scmp.ne.s32.totalorder %s250, %s252
    %p256 = scmp.eq.s32.totalorder %s22, 0
    %p257 = por %p255, %p256
    %p258 = scmp.ne.s32.totalorder %s250, %s252
    %p259 = scmp.eq.s32.totalorder %s27, 1
    %p260 = por %p258, %p259
    %p261 = scmp.ne.s32.totalorder %s252, %s253
    %p262 = scmp.eq.s32.totalorder %s27, 0
    %p263 = por %p261, %p262
    %p264 = scmp.ne.s32.totalorder %s252, %s253
    %p265 = scmp.eq.s32.totalorder %s28, 1
    %p266 = por %p264, %p265
    %p268 = scmp.ne.s32.totalorder %s253, %s267
    %p269 = scmp.eq.s32.totalorder %s28, 0
    %p270 = por %p268, %p269
    %s272 = sadd.s32 %s271, 1
    %p275 = scmp.eq.s32.totalorder %s22, 1
    %p276 = scmp.ne.s32.totalorder %s271, %s273
    %p277 = scmp.eq.s32.totalorder %s22, 0
    %p278 = por %p276, %p277
    %p279 = scmp.ne.s32.totalorder %s271, %s273
    %p280 = scmp.eq.s32.totalorder %s27, 1
    %p281 = por %p279, %p280
    %p282 = scmp.ne.s32.totalorder %s273, %s274
    %p283 = scmp.eq.s32.totalorder %s27, 0
    %p284 = por %p282, %p283
    %p285 = scmp.ne.s32.totalorder %s273, %s274
    %p286 = scmp.eq.s32.totalorder %s28, 1
    %p287 = por %p285, %p286
    %p289 = scmp.ne.s32.totalorder %s274, %s288
    %p290 = scmp.eq.s32.totalorder %s28, 0
    %p291 = por %p289, %p290
    %s292 = ssub.s32 %s22, %s29
    %p293 = scmp.eq.s32.totalorder %s292, 0
    %s295 = sadd.s32 %s294, 1
    %s296 = scalar_select %p293, %s294, %s295
    %p299 = pneg %p293
    %p300 = scmp.eq.s32.totalorder %s22, 1
    %p301 = por %p299, %p300
    %p302 = scmp.ne.s32.totalorder %s294, %s297
    %p303 = scmp.eq.s32.totalorder %s22, 0
    %p304 = por %p302, %p303
    %p305 = scmp.ne.s32.totalorder %s294, %s297
    %p306 = scmp.eq.s32.totalorder %s27, 1
    %p307 = por %p305, %p306
    %p308 = scmp.ne.s32.totalorder %s297, %s298
    %p309 = scmp.eq.s32.totalorder %s27, 0
    %p310 = por %p308, %p309
    %p311 = scmp.ne.s32.totalorder %s297, %s298
    %p312 = scmp.eq.s32.totalorder %s28, 1
    %p313 = por %p311, %p312
    %p315 = scmp.ne.s32.totalorder %s298, %s314
    %p316 = scmp.eq.s32.totalorder %s28, 0
    %p317 = por %p315, %p316
    %s318 = ssub.s32 %s22, %s29
    %p319 = scmp.eq.s32.totalorder %s318, 0
    %s321 = sadd.s32 %s320, 1
    %s322 = scalar_select %p319, %s320, %s321
    %p325 = pneg %p319
    %p326 = scmp.eq.s32.totalorder %s22, 1
    %p327 = por %p325, %p326
    %p328 = scmp.ne.s32.totalorder %s320, %s323
    %p329 = scmp.eq.s32.totalorder %s22, 0
    %p330 = por %p328, %p329
    %p331 = scmp.ne.s32.totalorder %s320, %s323
    %p332 = scmp.eq.s32.totalorder %s27, 1
    %p333 = por %p331, %p332
    %p334 = scmp.ne.s32.totalorder %s323, %s324
    %p335 = scmp.eq.s32.totalorder %s27, 0
    %p336 = por %p334, %p335
    %p337 = scmp.ne.s32.totalorder %s323, %s324
    %p338 = scmp.eq.s32.totalorder %s28, 1
    %p339 = por %p337, %p338
    %p341 = scmp.ne.s32.totalorder %s324, %s340
    %p342 = scmp.eq.s32.totalorder %s28, 0
    %p343 = por %p341, %p342
    %s344 = ssub.s32 %s22, %s29
    %p345 = scmp.eq.s32.totalorder %s344, 0
    %s347 = sadd.s32 %s346, 1
    %s348 = scalar_select %p345, %s346, %s347
    %p351 = pneg %p345
    %p352 = scmp.eq.s32.totalorder %s22, 1
    %p353 = por %p351, %p352
    %p354 = scmp.ne.s32.totalorder %s346, %s349
    %p355 = scmp.eq.s32.totalorder %s22, 0
    %p356 = por %p354, %p355
    %p357 = scmp.ne.s32.totalorder %s346, %s349
    %p358 = scmp.eq.s32.totalorder %s27, 1
    %p359 = por %p357, %p358
    %p360 = scmp.ne.s32.totalorder %s349, %s350
    %p361 = scmp.eq.s32.totalorder %s27, 0
    %p362 = por %p360, %p361
    %p363 = scmp.ne.s32.totalorder %s349, %s350
    %p364 = scmp.eq.s32.totalorder %s28, 1
    %p365 = por %p363, %p364
    %p367 = scmp.ne.s32.totalorder %s350, %s366
    %p368 = scmp.eq.s32.totalorder %s28, 0
    %p369 = por %p367, %p368
    %s370 = ssub.s32 %s22, %s29
    %p371 = scmp.eq.s32.totalorder %s370, 0
    %s373 = sadd.s32 %s372, 1
    %s374 = scalar_select %p371, %s372, %s373
    %p377 = pneg %p371
    %p378 = scmp.eq.s32.totalorder %s22, 1
    %p379 = por %p377, %p378
    %p380 = scmp.ne.s32.totalorder %s372, %s375
    %p381 = scmp.eq.s32.totalorder %s22, 0
    %p382 = por %p380, %p381
    %p383 = scmp.ne.s32.totalorder %s372, %s375
    %p384 = scmp.eq.s32.totalorder %s27, 1
    %p385 = por %p383, %p384
    %p386 = scmp.ne.s32.totalorder %s375, %s376
    %p387 = scmp.eq.s32.totalorder %s27, 0
    %p388 = por %p386, %p387
    %p389 = scmp.ne.s32.totalorder %s375, %s376
    %p390 = scmp.eq.s32.totalorder %s28, 1
    %p391 = por %p389, %p390
    %p393 = scmp.ne.s32.totalorder %s376, %s392
    %p394 = scmp.eq.s32.totalorder %s28, 0
    %p395 = por %p393, %p394
    %p396 = scmp.le.s32.totalorder 1, %s22
    %p397 = scmp.lt.s32.totalorder %s22, 3
    %p398 = pnand %p396, %p397
    %p399 = pneg %p398
    // Predicated region
    $region9: #{tpu_custom_call.1} parent=5 // pred_check
      _
    $region10: #{tpu_custom_call.1} parent=5 // pred_check_branch
      %401 = sbr.rel (%p398) target = $region12
    $region11: #{tpu_custom_call.1} parent=5 // pred_region
      %s402 = ssub.s32 %s22, 1
      // Predicated region
      $region13: #{tpu_custom_call.1} parent=11 // pred_check
        %p403 = pneg %p95
      $region14: #{tpu_custom_call.1} parent=11 // pred_check_branch
        %405 = sbr.rel (%p403) target = $region16
      $region15: #{tpu_custom_call.1} parent=11 // pred_region
        _
      $region16: #{tpu_custom_call.1} parent=11 // pred_fallthru
        _
      // Predicated region
      $region17: #{tpu_custom_call.1} parent=11 // pred_check
        %p406 = pneg %p116
      $region18: #{tpu_custom_call.1} parent=11 // pred_check_branch
        %408 = sbr.rel (%p406) target = $region20
      $region19: #{tpu_custom_call.1} parent=11 // pred_region
        _
      $region20: #{tpu_custom_call.1} parent=11 // pred_fallthru
        _
      // Predicated region
      $region21: #{tpu_custom_call.1} parent=11 // pred_check
        %p409 = pneg %p137
      $region22: #{tpu_custom_call.1} parent=11 // pred_check_branch
        %411 = sbr.rel (%p409) target = $region24
      $region23: #{tpu_custom_call.1} parent=11 // pred_region
        _
      $region24: #{tpu_custom_call.1} parent=11 // pred_fallthru
        _
      // Predicated region
      $region25: #{tpu_custom_call.1} parent=11 // pred_check
        %p412 = pneg %p158
      $region26: #{tpu_custom_call.1} parent=11 // pred_check_branch
        %414 = sbr.rel (%p412) target = $region28
      $region27: #{tpu_custom_call.1} parent=11 // pred_region
        _
      $region28: #{tpu_custom_call.1} parent=11 // pred_fallthru
        _
      // Predicated region
      $region29: #{tpu_custom_call.1} parent=11 // pred_check
        %p415 = pneg %p179
      $region30: #{tpu_custom_call.1} parent=11 // pred_check_branch
        %417 = sbr.rel (%p415) target = $region32
      $region31: #{tpu_custom_call.1} parent=11 // pred_region
        _
      $region32: #{tpu_custom_call.1} parent=11 // pred_fallthru
        _
      // Predicated region
      $region33: #{tpu_custom_call.1} parent=11 // pred_check
        %p418 = pneg %p200
      $region34: #{tpu_custom_call.1} parent=11 // pred_check_branch
        %420 = sbr.rel (%p418) target = $region36
      $region35: #{tpu_custom_call.1} parent=11 // pred_region
        _
      $region36: #{tpu_custom_call.1} parent=11 // pred_fallthru
        _
      // Predicated region
      $region37: #{tpu_custom_call.1} parent=11 // pred_check
        %p421 = pneg %p221
      $region38: #{tpu_custom_call.1} parent=11 // pred_check_branch
        %423 = sbr.rel (%p421) target = $region40
      $region39: #{tpu_custom_call.1} parent=11 // pred_region
        _
      $region40: #{tpu_custom_call.1} parent=11 // pred_fallthru
        _
      // Predicated region
      $region41: #{tpu_custom_call.1} parent=11 // pred_check
        %p424 = pneg %p242
      $region42: #{tpu_custom_call.1} parent=11 // pred_check_branch
        %426 = sbr.rel (%p424) target = $region44
      $region43: #{tpu_custom_call.1} parent=11 // pred_region
        _
      $region44: #{tpu_custom_call.1} parent=11 // pred_fallthru
        _
      // Predicated region
      $region45: #{tpu_custom_call.1} parent=11 // pred_check
        %p427 = pneg %p263
      $region46: #{tpu_custom_call.1} parent=11 // pred_check_branch
        %429 = sbr.rel (%p427) target = $region48
      $region47: #{tpu_custom_call.1} parent=11 // pred_region
        _
      $region48: #{tpu_custom_call.1} parent=11 // pred_fallthru
        _
      // Predicated region
      $region49: #{tpu_custom_call.1} parent=11 // pred_check
        %p430 = pneg %p284
      $region50: #{tpu_custom_call.1} parent=11 // pred_check_branch
        %432 = sbr.rel (%p430) target = $region52
      $region51: #{tpu_custom_call.1} parent=11 // pred_region
        _
      $region52: #{tpu_custom_call.1} parent=11 // pred_fallthru
        _
    $region12: #{tpu_custom_call.1} parent=5 // pred_fallthru
      _
    %p433 = scmp.lt.s32.totalorder %s22, 2
    // Predicated region
    $region53: #{tpu_custom_call.1} parent=5 // pred_check
      %p434 = pneg %p433
    $region54: #{tpu_custom_call.1} parent=5 // pred_check_branch
      %436 = sbr.rel (%p434) target = $region56
    $region55: #{tpu_custom_call.1} parent=5 // pred_region
      // Predicated region
      $region57: #{tpu_custom_call.1} parent=55 // pred_check
        %p437 = pneg %p42
      $region58: #{tpu_custom_call.1} parent=55 // pred_check_branch
        %439 = sbr.rel (%p437) target = $region60
      $region59: #{tpu_custom_call.1} parent=55 // pred_region
        %s440 = smul.u32 2, %s22
        %p441 = scmp.lt.s32.totalorder %s440, 3
        %s442 = scalar_select %p441, %s440, 3
        %s443 = smul.addr %s442, 8
        %s444 = scalar_lea.vmem %s0, %s443
        %s445 = smul.u32 2, %s22
      $region60: #{tpu_custom_call.1} parent=55 // pred_fallthru
        _
      // Predicated region
      $region61: #{tpu_custom_call.1} parent=55 // pred_check
        %p446 = pneg %p68
      $region62: #{tpu_custom_call.1} parent=55 // pred_check_branch
        %448 = sbr.rel (%p446) target = $region64
      $region63: #{tpu_custom_call.1} parent=55 // pred_region
        %s449 = smul.u32 2, %s22
        %p450 = scmp.lt.s32.totalorder %s449, 3
        %s451 = scalar_select %p450, %s449, 3
        %s452 = smul.addr %s451, 8
        %s453 = scalar_lea.vmem %s1, %s452
        %s454 = smul.u32 2, %s22
      $region64: #{tpu_custom_call.1} parent=55 // pred_fallthru
        _
    $region56: #{tpu_custom_call.1} parent=5 // pred_fallthru
      _
    %p455 = scmp.le.s32.totalorder 1, %s22
    %p456 = scmp.lt.s32.totalorder %s22, 3
    %p457 = pnand %p455, %p456
    %p458 = pneg %p457
    // Predicated region
    $region65: #{tpu_custom_call.1} parent=5 // pred_check
      _
    $region66: #{tpu_custom_call.1} parent=5 // pred_check_branch
      %460 = sbr.rel (%p457) target = $region68
    $region67: #{tpu_custom_call.1} parent=5 // pred_region
      %s461 = ssub.s32 %s22, 1
      %s462 = smul.u32 2, %s27
      %p463 = scmp.lt.s32.totalorder %s462, 3
      %s464 = scalar_select %p463, %s462, 3
      %s465 = smul.addr %s464, 8
      %s466 = scalar_lea.vmem %s0, %s465
      %p467 = pneg %p48
      %p468 = pneg %p45
      %s469 = smul.u32 2, %s27
      %p470 = scmp.lt.s32.totalorder %s469, 3
      %s471 = scalar_select %p470, %s469, 3
      %s472 = smul.addr %s471, 8
      %s473 = scalar_lea.vmem %s1, %s472
      %p474 = pneg %p74
      %p475 = pneg %p71
      %p476 = pneg %p95
      %p477 = pneg %p92
      %p478 = pneg %p116
      %p479 = pneg %p113
      %p480 = pneg %p137
      %p481 = pneg %p134
      %p482 = pneg %p158
      %p483 = pneg %p155
      %p484 = pneg %p179
      %p485 = pneg %p176
      %p486 = pneg %p200
      %p487 = pneg %p197
      %p488 = pneg %p221
      %p489 = pneg %p218
      %p490 = pneg %p242
      %p491 = pneg %p239
      %p492 = pneg %p263
      %p493 = pneg %p260
      %p494 = pneg %p284
      %p495 = pneg %p281
      %p496 = pneg %p310
      %p497 = pneg %p307
      %s498 = smul.u32 2, %s27
      %p499 = scmp.lt.s32.totalorder %s498, 3
      %s500 = scalar_select %p499, %s498, 3
      %s501 = smul.addr %s500, 8
      %s502 = scalar_lea.vmem %s12, %s501
      %p503 = pneg %p336
      %p504 = pneg %p333
      %s505 = smul.u32 2, %s27
      %p506 = scmp.lt.s32.totalorder %s505, 3
      %s507 = scalar_select %p506, %s505, 3
      %s508 = smul.addr %s507, 8
      %s509 = scalar_lea.vmem %s13, %s508
      %p510 = pneg %p362
      %p511 = pneg %p359
      %s512 = smul.u32 2, %s27
      %p513 = scmp.lt.s32.totalorder %s512, 3
      %s514 = scalar_select %p513, %s512, 3
      %s515 = smul.addr %s514, 8
      %s516 = scalar_lea.vmem %s14, %s515
      %p517 = pneg %p388
      %p518 = pneg %p385
      %s519 = smul.u32 2, %s27
      %p520 = scmp.lt.s32.totalorder %s519, 3
      %s521 = scalar_select %p520, %s519, 3
      %s522 = smul.addr %s521, 8
      %s523 = scalar_lea.vmem %s15, %s522
      %s524 = smul.u32 2, %s27
      %p525 = scmp.lt.s32.totalorder %s524, 3
      %s526 = scalar_select %p525, %s524, 3
      %s527 = smul.addr %s526, 8
      %s528 = scalar_lea.vmem %s0, %s527
      %s529 = smul.u32 2, %s27
      %s530 = smul.u32 2, %s27
      %p531 = scmp.lt.s32.totalorder %s530, 3
      %s532 = scalar_select %p531, %s530, 3
      %s533 = smul.addr %s532, 8
      %s534 = scalar_lea.vmem %s1, %s533
      %s535 = smul.u32 2, %s27
      %s536 = smul.u32 2, %s27
      %p537 = scmp.lt.s32.totalorder %s536, 3
      %s538 = scalar_select %p537, %s536, 3
      %s539 = smul.addr %s538, 8
      %s540 = scalar_lea.vmem %s12, %s539
      %s541 = smul.u32 2, %s27
      %s542 = smul.u32 2, %s27
      %p543 = scmp.lt.s32.totalorder %s542, 3
      %s544 = scalar_select %p543, %s542, 3
      %s545 = smul.addr %s544, 8
      %s546 = scalar_lea.vmem %s13, %s545
      %s547 = smul.u32 2, %s27
      %s548 = smul.u32 2, %s27
      %p549 = scmp.lt.s32.totalorder %s548, 3
      %s550 = scalar_select %p549, %s548, 3
      %s551 = smul.addr %s550, 8
      %s552 = scalar_lea.vmem %s14, %s551
      %s553 = smul.u32 2, %s27
      %s554 = smul.u32 2, %s27
      %p555 = scmp.lt.s32.totalorder %s554, 3
      %s556 = scalar_select %p555, %s554, 3
      %s557 = smul.addr %s556, 8
      %s558 = scalar_lea.vmem %s15, %s557
      %s559 = smul.u32 2, %s27
      %v561 = vld [vmem:[%s528] sm:$0xff]
      %v562 = vld [vmem:[%s528 + $0x8] sm:$0xff]
      %v563 = vpack.c.bf16 %v562, %v561
      %v564 = vld [vmem:[%s2] sm:$0xf]
      %v565 = vld [vmem:[%s2 + $0x4] sm:$0xf]
      %v566 = vld [vmem:[%s3] sm:$0x1]
      %v568 = vlaneseq
      %v569 = vshrl.u32 %v568, 7
      %v570 = vsub.s32 0, %v569
      %v571 = vrot.slane %v566, %v570
      %v575 = vunpack.c.l.b16 %v564
      %v576 = vunpack.c.l.b16 %v565
      %v577 = vpack.c.b16 %v576, %v575
      %vm579 = vcmask 130048
      %v581 = vsel %vm579, %v563, 0
      %583 = vmatprep.subr.bf16.mxu0 0
      %584 = vmatpush1.bf16.msra.mxu0 %v577
      %585 = vmatprep.subr.bf16.mxu0 0
      %586 = vmatpush1.bf16.msra.mxu0 0
      %587 = vmatprep.subr.bf16.mxu0 0
      %588 = vmatpush1.bf16.msra.mxu0 0
      %589 = vmatprep.subr.bf16.mxu0 0
      %590 = vmatpush1.bf16.msra.mxu0 0
      %591 = vmatprep.subr.bf16.mxu0 0
      %592 = vmatpush1.bf16.msra.mxu0 0
      %593 = vmatprep.subr.bf16.mxu0 0
      %594 = vmatpush1.bf16.msra.mxu0 0
      %595 = vmatprep.subr.bf16.mxu0 0
      %596 = vmatpush1.bf16.msra.mxu0 0
      %597 = vmatprep.subr.bf16.mxu0 0
      %598 = vmatpush1.bf16.msra.mxu0 0
      %599 = vmatprep.subr.bf16.mxu0 0
      %600 = vmatpush1.bf16.msra.mxu0 0
      %601 = vmatprep.subr.bf16.mxu0 0
      %602 = vmatpush1.bf16.msra.mxu0 0
      %603 = vmatprep.subr.bf16.mxu0 0
      %604 = vmatpush1.bf16.msra.mxu0 0
      %605 = vmatprep.subr.bf16.mxu0 0
      %606 = vmatpush1.bf16.msra.mxu0 0
      %607 = vmatprep.subr.bf16.mxu0 0
      %608 = vmatpush1.bf16.msra.mxu0 0
      %609 = vmatprep.subr.bf16.mxu0 0
      %610 = vmatpush1.bf16.msra.mxu0 0
      %611 = vmatprep.subr.bf16.mxu0 0
      %612 = vmatpush1.bf16.msra.mxu0 0
      %613 = vmatprep.subr.bf16.mxu0 0
      %614 = vmatpush1.bf16.msra.mxu0 0
      %615 = vmatprep.mubr.bf16.mxu0 0
      %616 = vmatmul.mubr.bf16.gmra.mrb[0].mxu0 %v581
      %v617 = vpop.f32.mrb[0].mxu0
      %v618 = vadd.f32 %v571, %v617
      %v619 = vpop.f32.mrb[0].mxu0
      %v620 = vpop.f32.mrb[0].mxu0
      %v621 = vadd.f32 %v571, %v620
      %v622 = vpop.f32.mrb[0].mxu0
      %623 = vdwg.mxu0
      %v624 = vtanh.pop %v618
      %v625 = vtanh.pop %v621
      %v626 = vpack.c.bf16 %v625, %v624
      %v627 = vld [vmem:[%s4] sm:$0xf]
      %v628 = vld [vmem:[%s4 + $0x4] sm:$0xf]
      %v629 = vld [vmem:[%s4 + $0x8] sm:$0xf]
      %v630 = vld [vmem:[%s4 + $0xc] sm:$0xf]
      %v631 = vld [vmem:[%s5] sm:$0x1]
      %v633 = vlaneseq
      %v634 = vshrl.u32 %v633, 7
      %v635 = vsub.s32 0, %v634
      %v636 = vrot.slane %v631, %v635
      %v642 = vunpack.c.l.b16 %v627
      %v643 = vunpack.c.l.b16 %v628
      %v644 = vunpack.c.l.b16 %v629
      %v645 = vunpack.c.l.b16 %v630
      %v646 = vpack.c.b16 %v643, %v642
      %v647 = vpack.c.b16 %v645, %v644
      %vm650 = vcmask 261120
      %v652 = vsel %vm650, %v626, 0
      %654 = vmatprep.subr.bf16.mxu0 0
      %655 = vmatpush1.bf16.msra.mxu0 %v646
      %656 = vmatprep.subr.bf16.mxu0 0
      %657 = vmatpush1.bf16.msra.mxu0 %v647
      %658 = vmatprep.subr.bf16.mxu0 0
      %659 = vmatpush1.bf16.msra.mxu0 0
      %660 = vmatprep.subr.bf16.mxu0 0
      %661 = vmatpush1.bf16.msra.mxu0 0
      %662 = vmatprep.subr.bf16.mxu0 0
      %663 = vmatpush1.bf16.msra.mxu0 0
      %664 = vmatprep.subr.bf16.mxu0 0
      %665 = vmatpush1.bf16.msra.mxu0 0
      %666 = vmatprep.subr.bf16.mxu0 0
      %667 = vmatpush1.bf16.msra.mxu0 0
      %668 = vmatprep.subr.bf16.mxu0 0
      %669 = vmatpush1.bf16.msra.mxu0 0
      %670 = vmatprep.subr.bf16.mxu0 0
      %671 = vmatpush1.bf16.msra.mxu0 0
      %672 = vmatprep.subr.bf16.mxu0 0
      %673 = vmatpush1.bf16.msra.mxu0 0
      %674 = vmatprep.subr.bf16.mxu0 0
      %675 = vmatpush1.bf16.msra.mxu0 0
      %676 = vmatprep.subr.bf16.mxu0 0
      %677 = vmatpush1.bf16.msra.mxu0 0
      %678 = vmatprep.subr.bf16.mxu0 0
      %679 = vmatpush1.bf16.msra.mxu0 0
      %680 = vmatprep.subr.bf16.mxu0 0
      %681 = vmatpush1.bf16.msra.mxu0 0
      %682 = vmatprep.subr.bf16.mxu0 0
      %683 = vmatpush1.bf16.msra.mxu0 0
      %684 = vmatprep.subr.bf16.mxu0 0
      %685 = vmatpush1.bf16.msra.mxu0 0
      %686 = vmatprep.mubr.bf16.mxu0 0
      %687 = vmatmul.mubr.bf16.gmra.mrb[0].mxu0 %v652
      %v688 = vpop.f32.mrb[0].mxu0
      %v689 = vadd.f32 %v636, %v688
      %v690 = vpop.f32.mrb[0].mxu0
      %v691 = vpop.f32.mrb[0].mxu0
      %v692 = vadd.f32 %v636, %v691
      %v693 = vpop.f32.mrb[0].mxu0
      %694 = vdwg.mxu0
      %v695 = vld [vmem:[%s6] sm:$0xf]
      %v696 = vld [vmem:[%s6 + $0x4] sm:$0xf]
      %v697 = vld [vmem:[%s6 + $0x8] sm:$0xf]
      %v698 = vld [vmem:[%s6 + $0xc] sm:$0xf]
      %v699 = vld [vmem:[%s7] sm:$0x1]
      %v701 = vlaneseq
      %v702 = vshrl.u32 %v701, 7
      %v703 = vsub.s32 0, %v702
      %v704 = vrot.slane %v699, %v703
      %v710 = vunpack.c.l.b16 %v695
      %v711 = vunpack.c.l.b16 %v696
      %v712 = vunpack.c.l.b16 %v697
      %v713 = vunpack.c.l.b16 %v698
      %v714 = vpack.c.b16 %v711, %v710
      %v715 = vpack.c.b16 %v713, %v712
      %718 = vmatprep.subr.bf16.mxu0 0
      %719 = vmatpush1.bf16.msra.mxu0 %v714
      %720 = vmatprep.subr.bf16.mxu0 0
      %721 = vmatpush1.bf16.msra.mxu0 %v715
      %722 = vmatprep.subr.bf16.mxu0 0
      %723 = vmatpush1.bf16.msra.mxu0 0
      %724 = vmatprep.subr.bf16.mxu0 0
      %725 = vmatpush1.bf16.msra.mxu0 0
      %726 = vmatprep.subr.bf16.mxu0 0
      %727 = vmatpush1.bf16.msra.mxu0 0
      %728 = vmatprep.subr.bf16.mxu0 0
      %729 = vmatpush1.bf16.msra.mxu0 0
      %730 = vmatprep.subr.bf16.mxu0 0
      %731 = vmatpush1.bf16.msra.mxu0 0
      %732 = vmatprep.subr.bf16.mxu0 0
      %733 = vmatpush1.bf16.msra.mxu0 0
      %734 = vmatprep.subr.bf16.mxu0 0
      %735 = vmatpush1.bf16.msra.mxu0 0
      %736 = vmatprep.subr.bf16.mxu0 0
      %737 = vmatpush1.bf16.msra.mxu0 0
      %738 = vmatprep.subr.bf16.mxu0 0
      %739 = vmatpush1.bf16.msra.mxu0 0
      %740 = vmatprep.subr.bf16.mxu0 0
      %741 = vmatpush1.bf16.msra.mxu0 0
      %742 = vmatprep.subr.bf16.mxu0 0
      %743 = vmatpush1.bf16.msra.mxu0 0
      %744 = vmatprep.subr.bf16.mxu0 0
      %745 = vmatpush1.bf16.msra.mxu0 0
      %746 = vmatprep.subr.bf16.mxu0 0
      %747 = vmatpush1.bf16.msra.mxu0 0
      %748 = vmatprep.subr.bf16.mxu0 0
      %749 = vmatpush1.bf16.msra.mxu0 0
      %750 = vmatprep.mubr.bf16.mxu0 0
      %751 = vmatmul.mubr.bf16.gmra.mrb[0].mxu0 %v652
      %v752 = vpop.f32.mrb[0].mxu0
      %v753 = vadd.f32 %v704, %v752
      %v754 = vpop.f32.mrb[0].mxu0
      %v755 = vpop.f32.mrb[0].mxu0
      %v756 = vadd.f32 %v704, %v755
      %v757 = vpop.f32.mrb[0].mxu0
      %758 = vdwg.mxu0
      %v759 = vmul.f32 %v753, 0.5
      %v760 = vmul.f32 %v756, 0.5
      %v761 = vmul.f32 %v759, 1.442695
      %v762 = vpow.pop %v761
      %v763 = vmul.f32 %v760, 1.442695
      %v764 = vpow.pop %v763
      %v765 = vld [vmem:[%s534] sm:$0xff]
      %v766 = vld [vmem:[%s534 + $0x8] sm:$0xff]
      %v767 = vmul.f32 %v765, %v762
      %v768 = vmul.f32 %v766, %v764
      %v769 = vadd.f32 %v689, %v767
      %v770 = vadd.f32 %v692, %v768
      %v771 = vpack.c.bf16 %v770, %v769
      %v772 = vld [vmem:[%s8] sm:$0xf]
      %v773 = vld [vmem:[%s9] sm:$0x1]
      %v775 = vlaneseq
      %v776 = vshrl.u32 %v775, 7
      %v777 = vsub.s32 0, %v776
      %v778 = vrot.slane %v773, %v777
      %vm780 = vcmask 64512
      %v782 = vsel %vm780, %v771, 0
      %vm784 = vcmask 1043456
      %v786 = vsel %vm784, %v772, 0
      %788 = vmatprep.subr.bf16.mxu0 0
      %789 = vmatpush1.bf16.msra.mxu0 %v786
      %790 = vmatprep.subr.bf16.mxu0 0
      %791 = vmatpush1.bf16.msra.mxu0 0
      %792 = vmatprep.subr.bf16.mxu0 0
      %793 = vmatpush1.bf16.msra.mxu0 0
      %794 = vmatprep.subr.bf16.mxu0 0
      %795 = vmatpush1.bf16.msra.mxu0 0
      %796 = vmatprep.subr.bf16.mxu0 0
      %797 = vmatpush1.bf16.msra.mxu0 0
      %798 = vmatprep.subr.bf16.mxu0 0
      %799 = vmatpush1.bf16.msra.mxu0 0
      %800 = vmatprep.subr.bf16.mxu0 0
      %801 = vmatpush1.bf16.msra.mxu0 0
      %802 = vmatprep.subr.bf16.mxu0 0
      %803 = vmatpush1.bf16.msra.mxu0 0
      %804 = vmatprep.subr.bf16.mxu0 0
      %805 = vmatpush1.bf16.msra.mxu0 0
      %806 = vmatprep.subr.bf16.mxu0 0
      %807 = vmatpush1.bf16.msra.mxu0 0
      %808 = vmatprep.subr.bf16.mxu0 0
      %809 = vmatpush1.bf16.msra.mxu0 0
      %810 = vmatprep.subr.bf16.mxu0 0
      %811 = vmatpush1.bf16.msra.mxu0 0
      %812 = vmatprep.subr.bf16.mxu0 0
      %813 = vmatpush1.bf16.msra.mxu0 0
      %814 = vmatprep.subr.bf16.mxu0 0
      %815 = vmatpush1.bf16.msra.mxu0 0
      %816 = vmatprep.subr.bf16.mxu0 0
      %817 = vmatpush1.bf16.msra.mxu0 0
      %818 = vmatprep.subr.bf16.mxu0 0
      %819 = vmatpush1.bf16.msra.mxu0 0
      %820 = vmatprep.mubr.bf16.mxu0 0
      %821 = vmatmul.mubr.bf16.gmra.mrb[0].mxu0 %v782
      %v822 = vpop.f32.mrb[0].mxu0
      %v823 = vadd.f32 %v778, %v822
      %v824 = vpop.f32.mrb[0].mxu0
      %v825 = vpop.f32.mrb[0].mxu0
      %v826 = vadd.f32 %v778, %v825
      %v827 = vpop.f32.mrb[0].mxu0
      %828 = vdwg.mxu0
      %v829 = vtanh.pop %v823
      %v830 = vtanh.pop %v826
      %v831 = vpack.c.bf16 %v830, %v829
      %v832 = vld [vmem:[%s10] sm:$0xf]
      %v833 = vld [vmem:[%s10 + $0x4] sm:$0xf]
      %v834 = vld [vmem:[%s10 + $0x8] sm:$0xf]
      %v835 = vld [vmem:[%s10 + $0xc] sm:$0xf]
      %v836 = vld [vmem:[%s11] sm:$0x1]
      %v838 = vlaneseq
      %v839 = vshrl.u32 %v838, 7
      %v840 = vsub.s32 0, %v839
      %v841 = vrot.slane %v836, %v840
      %v847 = vunpack.c.l.b16 %v832
      %v848 = vunpack.c.l.b16 %v833
      %v849 = vunpack.c.l.b16 %v834
      %v850 = vunpack.c.l.b16 %v835
      %v851 = vpack.c.b16 %v848, %v847
      %v852 = vpack.c.b16 %v850, %v849
      %v856 = vsel %vm650, %v831, 0
      %858 = vmatprep.subr.bf16.mxu0 0
      %859 = vmatpush1.bf16.msra.mxu0 %v851
      %860 = vmatprep.subr.bf16.mxu0 0
      %861 = vmatpush1.bf16.msra.mxu0 %v852
      %862 = vmatprep.subr.bf16.mxu0 0
      %863 = vmatpush1.bf16.msra.mxu0 0
      %864 = vmatprep.subr.bf16.mxu0 0
      %865 = vmatpush1.bf16.msra.mxu0 0
      %866 = vmatprep.subr.bf16.mxu0 0
      %867 = vmatpush1.bf16.msra.mxu0 0
      %868 = vmatprep.subr.bf16.mxu0 0
      %869 = vmatpush1.bf16.msra.mxu0 0
      %870 = vmatprep.subr.bf16.mxu0 0
      %871 = vmatpush1.bf16.msra.mxu0 0
      %872 = vmatprep.subr.bf16.mxu0 0
      %873 = vmatpush1.bf16.msra.mxu0 0
      %874 = vmatprep.subr.bf16.mxu0 0
      %875 = vmatpush1.bf16.msra.mxu0 0
      %876 = vmatprep.subr.bf16.mxu0 0
      %877 = vmatpush1.bf16.msra.mxu0 0
      %878 = vmatprep.subr.bf16.mxu0 0
      %879 = vmatpush1.bf16.msra.mxu0 0
      %880 = vmatprep.subr.bf16.mxu0 0
      %881 = vmatpush1.bf16.msra.mxu0 0
      %882 = vmatprep.subr.bf16.mxu0 0
      %883 = vmatpush1.bf16.msra.mxu0 0
      %884 = vmatprep.subr.bf16.mxu0 0
      %885 = vmatpush1.bf16.msra.mxu0 0
      %886 = vmatprep.subr.bf16.mxu0 0
      %887 = vmatpush1.bf16.msra.mxu0 0
      %888 = vmatprep.subr.bf16.mxu0 0
      %889 = vmatpush1.bf16.msra.mxu0 0
      %890 = vmatprep.mubr.bf16.mxu0 0
      %891 = vmatmul.mubr.bf16.gmra.mrb[0].mxu0 %v856
      %v892 = vpop.f32.mrb[0].mxu0
      %v893 = vadd.f32 %v841, %v892
      %v894 = vpop.f32.mrb[0].mxu0
      %v895 = vpop.f32.mrb[0].mxu0
      %v896 = vadd.f32 %v841, %v895
      %v897 = vpop.f32.mrb[0].mxu0
      %898 = vdwg.mxu0
      %899 = vst.msk [vmem:[%s540] sm:$0xff] %vm579, %v893
      %900 = vst.msk [vmem:[%s540 + $0x8] sm:$0xff] %vm579, %v896
      %901 = vst.msk [vmem:[%s546] sm:$0xff] %vm780, %v689
      %902 = vst.msk [vmem:[%s546 + $0x8] sm:$0xff] %vm780, %v692
      %903 = vst.msk [vmem:[%s552] sm:$0xff] %vm780, %v753
      %904 = vst.msk [vmem:[%s552 + $0x8] sm:$0xff] %vm780, %v756
      %905 = vst.msk [vmem:[%s558] sm:$0xff] %vm780, %v769
      %906 = vst.msk [vmem:[%s558 + $0x8] sm:$0xff] %vm780, %v770
      %s907 = smul.u32 2, %s27
      %p908 = scmp.lt.s32.totalorder %s907, 3
      %s909 = scalar_select %p908, %s907, 3
      %s910 = smul.addr %s909, 8
      %s911 = scalar_lea.vmem %s12, %s910
      %s912 = smul.u32 2, %s27
      %p913 = scmp.lt.s32.totalorder %s912, 3
      %s914 = scalar_select %p913, %s912, 3
      %s915 = smul.addr %s914, 8
      %s916 = scalar_lea.vmem %s13, %s915
      %s917 = smul.u32 2, %s27
      %p918 = scmp.lt.s32.totalorder %s917, 3
      %s919 = scalar_select %p918, %s917, 3
      %s920 = smul.addr %s919, 8
      %s921 = scalar_lea.vmem %s14, %s920
      %s922 = smul.u32 2, %s27
      %p923 = scmp.lt.s32.totalorder %s922, 3
      %s924 = scalar_select %p923, %s922, 3
      %s925 = smul.addr %s924, 8
      %s926 = scalar_lea.vmem %s15, %s925
      // Predicated region
      $region69: #{tpu_custom_call.1} parent=67 // pred_check
        %p927 = pneg %p307
      $region70: #{tpu_custom_call.1} parent=67 // pred_check_branch
        %929 = sbr.rel (%p927) target = $region72
      $region71: #{tpu_custom_call.1} parent=67 // pred_region
        %s930 = smul.u32 2, %s27
      $region72: #{tpu_custom_call.1} parent=67 // pred_fallthru
        _
      // Predicated region
      $region73: #{tpu_custom_call.1} parent=67 // pred_check
        %p931 = pneg %p333
      $region74: #{tpu_custom_call.1} parent=67 // pred_check_branch
        %933 = sbr.rel (%p931) target = $region76
      $region75: #{tpu_custom_call.1} parent=67 // pred_region
        %s934 = smul.u32 2, %s27
      $region76: #{tpu_custom_call.1} parent=67 // pred_fallthru
        _
      // Predicated region
      $region77: #{tpu_custom_call.1} parent=67 // pred_check
        %p935 = pneg %p359
      $region78: #{tpu_custom_call.1} parent=67 // pred_check_branch
        %937 = sbr.rel (%p935) target = $region80
      $region79: #{tpu_custom_call.1} parent=67 // pred_region
        %s938 = smul.u32 2, %s27
      $region80: #{tpu_custom_call.1} parent=67 // pred_fallthru
        _
      // Predicated region
      $region81: #{tpu_custom_call.1} parent=67 // pred_check
        %p939 = pneg %p385
      $region82: #{tpu_custom_call.1} parent=67 // pred_check_branch
        %941 = sbr.rel (%p939) target = $region84
      $region83: #{tpu_custom_call.1} parent=67 // pred_region
        %s942 = smul.u32 2, %s27
      $region84: #{tpu_custom_call.1} parent=67 // pred_fallthru
        _
    $region68: #{tpu_custom_call.1} parent=5 // pred_fallthru
      _
    %p943 = scmp.le.s32.totalorder 2, %s22
    // Predicated region
    $region85: #{tpu_custom_call.1} parent=5 // pred_check
      %p944 = pneg %p943
    $region86: #{tpu_custom_call.1} parent=5 // pred_check_branch
      %946 = sbr.rel (%p944) target = $region88
    $region87: #{tpu_custom_call.1} parent=5 // pred_region
      %s947 = ssub.s32 %s22, 2
      // Predicated region
      $region89: #{tpu_custom_call.1} parent=87 // pred_check
        %p948 = pneg %p313
      $region90: #{tpu_custom_call.1} parent=87 // pred_check_branch
        %950 = sbr.rel (%p948) target = $region92
      $region91: #{tpu_custom_call.1} parent=87 // pred_region
        %s951 = smul.u32 2, %s28
        %p952 = scmp.lt.s32.totalorder %s951, 3
        %s953 = scalar_select %p952, %s951, 3
        %s954 = smul.addr %s953, 8
        %s955 = scalar_lea.vmem %s12, %s954
      $region92: #{tpu_custom_call.1} parent=87 // pred_fallthru
        _
      // Predicated region
      $region93: #{tpu_custom_call.1} parent=87 // pred_check
        %p956 = pneg %p339
      $region94: #{tpu_custom_call.1} parent=87 // pred_check_branch
        %958 = sbr.rel (%p956) target = $region96
      $region95: #{tpu_custom_call.1} parent=87 // pred_region
        %s959 = smul.u32 2, %s28
        %p960 = scmp.lt.s32.totalorder %s959, 3
        %s961 = scalar_select %p960, %s959, 3
        %s962 = smul.addr %s961, 8
        %s963 = scalar_lea.vmem %s13, %s962
      $region96: #{tpu_custom_call.1} parent=87 // pred_fallthru
        _
      // Predicated region
      $region97: #{tpu_custom_call.1} parent=87 // pred_check
        %p964 = pneg %p365
      $region98: #{tpu_custom_call.1} parent=87 // pred_check_branch
        %966 = sbr.rel (%p964) target = $region100
      $region99: #{tpu_custom_call.1} parent=87 // pred_region
        %s967 = smul.u32 2, %s28
        %p968 = scmp.lt.s32.totalorder %s967, 3
        %s969 = scalar_select %p968, %s967, 3
        %s970 = smul.addr %s969, 8
        %s971 = scalar_lea.vmem %s14, %s970
      $region100: #{tpu_custom_call.1} parent=87 // pred_fallthru
        _
      // Predicated region
      $region101: #{tpu_custom_call.1} parent=87 // pred_check
        %p972 = pneg %p391
      $region102: #{tpu_custom_call.1} parent=87 // pred_check_branch
        %974 = sbr.rel (%p972) target = $region104
      $region103: #{tpu_custom_call.1} parent=87 // pred_region
        %s975 = smul.u32 2, %s28
        %p976 = scmp.lt.s32.totalorder %s975, 3
        %s977 = scalar_select %p976, %s975, 3
        %s978 = smul.addr %s977, 8
        %s979 = scalar_lea.vmem %s15, %s978
      $region104: #{tpu_custom_call.1} parent=87 // pred_fallthru
        _
    $region88: #{tpu_custom_call.1} parent=5 // pred_fallthru
      _
  $region6: #{tpu_custom_call.1} parent=0 // loop_footer
    %s26 = sadd.s32 1, %s22
  $region7: #{tpu_custom_call.1} parent=0 // loop_footer_branch
    %21 = sbr.rel target = $region3
  $region8: #{tpu_custom_call.1} parent=0 // loop_exit
    _

</llo_original>
